<compile_context>
chip_gen: v6e
topology: v6e:2x2x1
jax: 0.10.0
libtpu: 0.0.40
codegen_flags: <defaults>
</compile_context>

<pallas_src>
import math

import jax
import jax.numpy as jnp
from jax.experimental import pallas as pl
from jax.experimental.pallas import tpu as pltpu

HIDDEN_SIZE = 50
INPUT_SIZE = 1
OUTPUT_SIZE = 1


def lstm_kernel(x_ref, w_ih_ref, w_hh_ref, b_ref, w_fc_ref, b_fc_ref, out_ref):
    """Entire LSTM forward in one grid step; everything is VMEM-resident.

    Fused-gate layout: weights are stacked as (in, 4*HP) with gate order
    [i, f, o, g]; each gate occupies a lane-aligned HP-wide (HP = multiple of 128)
    slab so per-step gate slices never cross-lane-rotate.
    """
    B, T, I = x_ref.shape
    HP = w_hh_ref.shape[0]          # lane-aligned (padded) hidden width
    G = w_hh_ref.shape[1]           # 4 * HP

    x = x_ref[...].astype(jnp.float32)          # (B, T, I)
    w_ih = w_ih_ref[...]                        # (I, 4*HP)
    w_hh = w_hh_ref[...]                        # (HP, 4*HP)
    b = b_ref[...]                              # (1, 4*HP)

    # Input projection for ALL timesteps, hoisted off the recurrent critical path.
    # With I == 1 a K=1 MXU contraction is an outer product -> do it on the VPU.
    if I == 1:
        xw = x * w_ih + b                       # (B,T,1)*(1,4HP) -> (B, T, 4*HP)
    else:
        xw = (jnp.dot(x.reshape(B * T, I), w_ih,
                      preferred_element_type=jnp.float32)
              .reshape(B, T, G) + b)

    h = jnp.zeros((B, HP), jnp.float32)
    c = jnp.zeros((B, HP), jnp.float32)

    # T is static -> full unroll (same code a fori_loop(unroll=True) would emit);
    # concrete t keeps every slice static.
    for t in range(T):
        gates = xw[:, t, :] + jnp.dot(h, w_hh,
                                      preferred_element_type=jnp.float32)  # (B, 4*HP)
        ifo = jax.nn.sigmoid(gates[:, :3 * HP])   # one EUP slab for i, f, o
        g = jnp.tanh(gates[:, 3 * HP:])           # one EUP slab for g
        i_g = ifo[:, :HP]                         # lane-aligned vreg selects
        f_g = ifo[:, HP:2 * HP]
        o_g = ifo[:, 2 * HP:]
        c = f_g * c + i_g * g
        h = o_g * jnp.tanh(c)

    # Final fc applied only to the last timestep's hidden state (out[:, -1, :]).
    # Padded rows of w_fc are zero (and padded lanes of h are zero), so result is exact.
    out_ref[...] = (jnp.dot(h, w_fc_ref[...],
                            preferred_element_type=jnp.float32)
                    + b_fc_ref[...]).astype(out_ref.dtype)


def _fuse_gates_padded(w, H, HP):
    """(4, in, H) in PyTorch gate order (i, f, g, o) -> (in, 4*HP) in order (i, f, o, g).

    Each gate is zero-padded from H to HP lanes so every gate slab starts on a
    128-lane vreg boundary inside the kernel.
    """
    perm = (0, 1, 3, 2)
    in_dim = w.shape[1]
    out = jnp.zeros((in_dim, 4 * HP), jnp.float32)
    for slot, k in enumerate(perm):
        out = out.at[:, slot * HP: slot * HP + H].set(w[k])
    return out


def simple_lstm_forward(x, params):
    B, T, I = x.shape
    H = params["w_hh"].shape[-1]
    O = params["w_fc"].shape[-1]
    HP = ((H + 127) // 128) * 128               # lane-aligned gate width (50 -> 128)

    # Fuse per-gate weights into single (in, 4*HP) operands, gate order (i, f, o, g),
    # zero-padded per gate.  (To load a real torch checkpoint: weight_ih_l0 is (4H, I);
    # reshape to (4, H, I) and transpose to (4, I, H) first.)
    w_ih_f = _fuse_gates_padded(params["w_ih"], H, HP)                    # (I, 4*HP)
    w_hh_f = jnp.zeros((HP, 4 * HP), jnp.float32).at[:H, :].set(
        _fuse_gates_padded(params["w_hh"], H, HP))                        # (HP, 4*HP)
    b_f = _fuse_gates_padded(params["b"], H, HP)                          # (1, 4*HP)
    w_fc_f = jnp.zeros((HP, O), jnp.float32).at[:H, :].set(params["w_fc"])  # (HP, O)

    grid_spec = pltpu.PrefetchScalarGridSpec(
        num_scalar_prefetch=0,
        grid=(1,),                               # single grid step; recurrence is in-kernel
        in_specs=[
            pl.BlockSpec((B, T, I), lambda i: (0, 0, 0)),       # whole x slab
            pl.BlockSpec((I, 4 * HP), lambda i: (0, 0)),        # fused W_ih (padded)
            pl.BlockSpec((HP, 4 * HP), lambda i: (0, 0)),       # fused W_hh (padded)
            pl.BlockSpec((1, 4 * HP), lambda i: (0, 0)),        # fused b_ih + b_hh
            pl.BlockSpec((HP, O), lambda i: (0, 0)),            # fc weight (padded rows)
            pl.BlockSpec((1, O), lambda i: (0, 0)),             # fc bias
        ],
        out_specs=pl.BlockSpec((B, O), lambda i: (0, 0)),
    )

    return pl.pallas_call(
        lstm_kernel,
        out_shape=jax.ShapeDtypeStruct((B, O), x.dtype),
        grid_spec=grid_spec,
        compiler_params=pltpu.CompilerParams(
            dimension_semantics=("arbitrary",)),
    )(x, w_ih_f, w_hh_f, b_f, w_fc_f, params["b_fc"])


def init_params(key, input_size, hidden_size, output_size):
    """Deterministic synthetic init, PyTorch-like uniform(-1/sqrt(H), 1/sqrt(H)).

    Gate-stacked in PyTorch order (i, f, g, o), already transposed for
    right-multiplication: (4, in, H).
    """
    ks = jax.random.split(key, 6)
    s = 1.0 / math.sqrt(hidden_size)

    def u(k, shape):
        return jax.random.uniform(k, shape, jnp.float32, minval=-s, maxval=s)

    return {
        "w_ih": u(ks[0], (4, input_size, hidden_size)),
        "w_hh": u(ks[1], (4, hidden_size, hidden_size)),
        # b_ih + b_hh combined
        "b": u(ks[2], (4, 1, hidden_size)) + u(ks[3], (4, 1, hidden_size)),
        "w_fc": u(ks[4], (hidden_size, output_size)),
        "b_fc": u(ks[5], (1, output_size)),
    }


def reference_forward(x, params):
    """Pure-JAX reference (lax.scan) mirroring torch.nn.LSTM + Linear."""
    B = x.shape[0]
    H = params["w_hh"].shape[-1]

    def step(carry, x_t):
        h, c = carry
        gates = [x_t @ params["w_ih"][k] + h @ params["w_hh"][k] + params["b"][k]
                 for k in range(4)]
        i = jax.nn.sigmoid(gates[0])
        f = jax.nn.sigmoid(gates[1])
        g = jnp.tanh(gates[2])
        o = jax.nn.sigmoid(gates[3])
        c = f * c + i * g
        h = o * jnp.tanh(c)
        return (h, c), None

    h0 = jnp.zeros((B, H), jnp.float32)
    c0 = jnp.zeros((B, H), jnp.float32)
    (h, _), _ = jax.lax.scan(step, (h0, c0), jnp.transpose(x, (1, 0, 2)))
    return h @ params["w_fc"] + params["b_fc"]


if __name__ == "__main__":
    key = jax.random.PRNGKey(0)
    k_x, k_p = jax.random.split(key)

    B, T = 4, 8
    x = jax.random.normal(k_x, (B, T, INPUT_SIZE), dtype=jnp.float32)
    params = init_params(k_p, INPUT_SIZE, HIDDEN_SIZE, OUTPUT_SIZE)

    out = simple_lstm_forward(x, params)
    out = jax.block_until_ready(out)

    ref = reference_forward(x, params)
    assert out.shape == (B, OUTPUT_SIZE)
    assert jnp.allclose(out, ref, atol=1e-5, rtol=1e-5), (out, ref)

    print("KERNEL_OK")
</pallas_src>

<mosaic_0001>
module attributes {stable_mosaic.version = 11 : i64} {
  func.func @lstm_kernel(%arg0: i32, %arg1: memref<4x8x1xf32, #tpu.memory_space<vmem>>, %arg2: memref<1x512xf32, #tpu.memory_space<vmem>>, %arg3: memref<128x512xf32, #tpu.memory_space<vmem>>, %arg4: memref<1x512xf32, #tpu.memory_space<vmem>>, %arg5: memref<128x1xf32, #tpu.memory_space<vmem>>, %arg6: memref<1x1xf32, #tpu.memory_space<vmem>>, %arg7: memref<4x1xf32, #tpu.memory_space<vmem>>) attributes {dimension_semantics = [#tpu.dimension_semantics<arbitrary>], iteration_bounds = array<i64: 1>, scalar_prefetch = 0 : i64, scratch_operands = 0 : i64, tpu.core_type = #tpu.core_type<tc>, window_params = [{pipeline_mode = #tpu.pipeline_mode<synchronous>, transform_indices = @transform_0, window_bounds = array<i64: 4, 8, 1>}, {pipeline_mode = #tpu.pipeline_mode<synchronous>, transform_indices = @transform_1, window_bounds = array<i64: 1, 512>}, {pipeline_mode = #tpu.pipeline_mode<synchronous>, transform_indices = @transform_2, window_bounds = array<i64: 128, 512>}, {pipeline_mode = #tpu.pipeline_mode<synchronous>, transform_indices = @transform_3, window_bounds = array<i64: 1, 512>}, {pipeline_mode = #tpu.pipeline_mode<synchronous>, transform_indices = @transform_4, window_bounds = array<i64: 128, 1>}, {pipeline_mode = #tpu.pipeline_mode<synchronous>, transform_indices = @transform_5, window_bounds = array<i64: 1, 1>}, {pipeline_mode = #tpu.pipeline_mode<synchronous>, transform_indices = @transform_6, window_bounds = array<i64: 4, 1>}]} {
    %c0 = arith.constant 0 : index
    %c0_0 = arith.constant 0 : index
    %c0_1 = arith.constant 0 : index
    %0 = vector.load %arg1[%c0, %c0_0, %c0_1] : memref<4x8x1xf32, #tpu.memory_space<vmem>>, vector<4x8x1xf32>
    %c0_2 = arith.constant 0 : index
    %c0_3 = arith.constant 0 : index
    %1 = vector.load %arg2[%c0_2, %c0_3] : memref<1x512xf32, #tpu.memory_space<vmem>>, vector<1x512xf32>
    %c0_4 = arith.constant 0 : index
    %c0_5 = arith.constant 0 : index
    %2 = vector.load %arg3[%c0_4, %c0_5] : memref<128x512xf32, #tpu.memory_space<vmem>>, vector<128x512xf32>
    %c0_6 = arith.constant 0 : index
    %c0_7 = arith.constant 0 : index
    %3 = vector.load %arg4[%c0_6, %c0_7] : memref<1x512xf32, #tpu.memory_space<vmem>>, vector<1x512xf32>
    %4 = vector.shape_cast %1 : vector<1x512xf32> to vector<1x1x512xf32>
    %5 = vector.broadcast %0 : vector<4x8x1xf32> to vector<4x8x512xf32>
    %6 = vector.broadcast %4 : vector<1x1x512xf32> to vector<4x8x512xf32>
    %7 = arith.mulf %5, %6 : vector<4x8x512xf32>
    %8 = vector.shape_cast %3 : vector<1x512xf32> to vector<1x1x512xf32>
    %9 = vector.broadcast %8 : vector<1x1x512xf32> to vector<4x8x512xf32>
    %10 = arith.addf %7, %9 : vector<4x8x512xf32>
    %cst = arith.constant 0.000000e+00 : f32
    %11 = vector.broadcast %cst : f32 to vector<4x128xf32>
    %cst_8 = arith.constant 0.000000e+00 : f32
    %12 = vector.broadcast %cst_8 : f32 to vector<4x128xf32>
    %13 = vector.extract_strided_slice %10 {offsets = [0, 0, 0], sizes = [4, 1, 512], strides = [1, 1, 1]} : vector<4x8x512xf32> to vector<4x1x512xf32>
    %14 = vector.shape_cast %13 : vector<4x1x512xf32> to vector<4x512xf32>
    %cst_9 = arith.constant dense<0.000000e+00> : vector<4x512xf32>
    %15 = tpu.matmul %11, %2, %cst_9 {dimension_numbers = #tpu.dot_dimension_numbers<[1], [0], [0], [1], [0, 0, 1, 1], [], []>} : vector<4x128xf32>, vector<128x512xf32>, vector<4x512xf32> -> vector<4x512xf32>
    %16 = arith.addf %14, %15 : vector<4x512xf32>
    %17 = vector.extract_strided_slice %16 {offsets = [0, 0], sizes = [4, 384], strides = [1, 1]} : vector<4x512xf32> to vector<4x384xf32>
    %18 = arith.negf %17 : vector<4x384xf32>
    %19 = math.exp %18 : vector<4x384xf32>
    %cst_10 = arith.constant 1.000000e+00 : f32
    %20 = vector.broadcast %cst_10 : f32 to vector<4x384xf32>
    %21 = arith.addf %20, %19 : vector<4x384xf32>
    %22 = arith.divf %20, %21 : vector<4x384xf32>
    %23 = vector.extract_strided_slice %16 {offsets = [0, 384], sizes = [4, 128], strides = [1, 1]} : vector<4x512xf32> to vector<4x128xf32>
    %24 = math.tanh %23 : vector<4x128xf32>
    %25 = vector.extract_strided_slice %22 {offsets = [0, 0], sizes = [4, 128], strides = [1, 1]} : vector<4x384xf32> to vector<4x128xf32>
    %26 = vector.extract_strided_slice %22 {offsets = [0, 128], sizes = [4, 128], strides = [1, 1]} : vector<4x384xf32> to vector<4x128xf32>
    %27 = vector.extract_strided_slice %22 {offsets = [0, 256], sizes = [4, 128], strides = [1, 1]} : vector<4x384xf32> to vector<4x128xf32>
    %28 = arith.mulf %26, %12 : vector<4x128xf32>
    %29 = arith.mulf %25, %24 : vector<4x128xf32>
    %30 = arith.addf %28, %29 : vector<4x128xf32>
    %31 = math.tanh %30 : vector<4x128xf32>
    %32 = arith.mulf %27, %31 : vector<4x128xf32>
    %33 = vector.extract_strided_slice %10 {offsets = [0, 1, 0], sizes = [4, 1, 512], strides = [1, 1, 1]} : vector<4x8x512xf32> to vector<4x1x512xf32>
    %34 = vector.shape_cast %33 : vector<4x1x512xf32> to vector<4x512xf32>
    %cst_11 = arith.constant dense<0.000000e+00> : vector<4x512xf32>
    %35 = tpu.matmul %32, %2, %cst_11 {dimension_numbers = #tpu.dot_dimension_numbers<[1], [0], [0], [1], [0, 0, 1, 1], [], []>} : vector<4x128xf32>, vector<128x512xf32>, vector<4x512xf32> -> vector<4x512xf32>
    %36 = arith.addf %34, %35 : vector<4x512xf32>
    %37 = vector.extract_strided_slice %36 {offsets = [0, 0], sizes = [4, 384], strides = [1, 1]} : vector<4x512xf32> to vector<4x384xf32>
    %38 = arith.negf %37 : vector<4x384xf32>
    %39 = math.exp %38 : vector<4x384xf32>
    %cst_12 = arith.constant 1.000000e+00 : f32
    %40 = vector.broadcast %cst_12 : f32 to vector<4x384xf32>
    %41 = arith.addf %40, %39 : vector<4x384xf32>
    %42 = arith.divf %40, %41 : vector<4x384xf32>
    %43 = vector.extract_strided_slice %36 {offsets = [0, 384], sizes = [4, 128], strides = [1, 1]} : vector<4x512xf32> to vector<4x128xf32>
    %44 = math.tanh %43 : vector<4x128xf32>
    %45 = vector.extract_strided_slice %42 {offsets = [0, 0], sizes = [4, 128], strides = [1, 1]} : vector<4x384xf32> to vector<4x128xf32>
    %46 = vector.extract_strided_slice %42 {offsets = [0, 128], sizes = [4, 128], strides = [1, 1]} : vector<4x384xf32> to vector<4x128xf32>
    %47 = vector.extract_strided_slice %42 {offsets = [0, 256], sizes = [4, 128], strides = [1, 1]} : vector<4x384xf32> to vector<4x128xf32>
    %48 = arith.mulf %46, %30 : vector<4x128xf32>
    %49 = arith.mulf %45, %44 : vector<4x128xf32>
    %50 = arith.addf %48, %49 : vector<4x128xf32>
    %51 = math.tanh %50 : vector<4x128xf32>
    %52 = arith.mulf %47, %51 : vector<4x128xf32>
    %53 = vector.extract_strided_slice %10 {offsets = [0, 2, 0], sizes = [4, 1, 512], strides = [1, 1, 1]} : vector<4x8x512xf32> to vector<4x1x512xf32>
    %54 = vector.shape_cast %53 : vector<4x1x512xf32> to vector<4x512xf32>
    %cst_13 = arith.constant dense<0.000000e+00> : vector<4x512xf32>
    %55 = tpu.matmul %52, %2, %cst_13 {dimension_numbers = #tpu.dot_dimension_numbers<[1], [0], [0], [1], [0, 0, 1, 1], [], []>} : vector<4x128xf32>, vector<128x512xf32>, vector<4x512xf32> -> vector<4x512xf32>
    %56 = arith.addf %54, %55 : vector<4x512xf32>
    %57 = vector.extract_strided_slice %56 {offsets = [0, 0], sizes = [4, 384], strides = [1, 1]} : vector<4x512xf32> to vector<4x384xf32>
    %58 = arith.negf %57 : vector<4x384xf32>
    %59 = math.exp %58 : vector<4x384xf32>
    %cst_14 = arith.constant 1.000000e+00 : f32
    %60 = vector.broadcast %cst_14 : f32 to vector<4x384xf32>
    %61 = arith.addf %60, %59 : vector<4x384xf32>
    %62 = arith.divf %60, %61 : vector<4x384xf32>
    %63 = vector.extract_strided_slice %56 {offsets = [0, 384], sizes = [4, 128], strides = [1, 1]} : vector<4x512xf32> to vector<4x128xf32>
    %64 = math.tanh %63 : vector<4x128xf32>
    %65 = vector.extract_strided_slice %62 {offsets = [0, 0], sizes = [4, 128], strides = [1, 1]} : vector<4x384xf32> to vector<4x128xf32>
    %66 = vector.extract_strided_slice %62 {offsets = [0, 128], sizes = [4, 128], strides = [1, 1]} : vector<4x384xf32> to vector<4x128xf32>
    %67 = vector.extract_strided_slice %62 {offsets = [0, 256], sizes = [4, 128], strides = [1, 1]} : vector<4x384xf32> to vector<4x128xf32>
    %68 = arith.mulf %66, %50 : vector<4x128xf32>
    %69 = arith.mulf %65, %64 : vector<4x128xf32>
    %70 = arith.addf %68, %69 : vector<4x128xf32>
    %71 = math.tanh %70 : vector<4x128xf32>
    %72 = arith.mulf %67, %71 : vector<4x128xf32>
    %73 = vector.extract_strided_slice %10 {offsets = [0, 3, 0], sizes = [4, 1, 512], strides = [1, 1, 1]} : vector<4x8x512xf32> to vector<4x1x512xf32>
    %74 = vector.shape_cast %73 : vector<4x1x512xf32> to vector<4x512xf32>
    %cst_15 = arith.constant dense<0.000000e+00> : vector<4x512xf32>
    %75 = tpu.matmul %72, %2, %cst_15 {dimension_numbers = #tpu.dot_dimension_numbers<[1], [0], [0], [1], [0, 0, 1, 1], [], []>} : vector<4x128xf32>, vector<128x512xf32>, vector<4x512xf32> -> vector<4x512xf32>
    %76 = arith.addf %74, %75 : vector<4x512xf32>
    %77 = vector.extract_strided_slice %76 {offsets = [0, 0], sizes = [4, 384], strides = [1, 1]} : vector<4x512xf32> to vector<4x384xf32>
    %78 = arith.negf %77 : vector<4x384xf32>
    %79 = math.exp %78 : vector<4x384xf32>
    %cst_16 = arith.constant 1.000000e+00 : f32
    %80 = vector.broadcast %cst_16 : f32 to vector<4x384xf32>
    %81 = arith.addf %80, %79 : vector<4x384xf32>
    %82 = arith.divf %80, %81 : vector<4x384xf32>
    %83 = vector.extract_strided_slice %76 {offsets = [0, 384], sizes = [4, 128], strides = [1, 1]} : vector<4x512xf32> to vector<4x128xf32>
    %84 = math.tanh %83 : vector<4x128xf32>
    %85 = vector.extract_strided_slice %82 {offsets = [0, 0], sizes = [4, 128], strides = [1, 1]} : vector<4x384xf32> to vector<4x128xf32>
    %86 = vector.extract_strided_slice %82 {offsets = [0, 128], sizes = [4, 128], strides = [1, 1]} : vector<4x384xf32> to vector<4x128xf32>
    %87 = vector.extract_strided_slice %82 {offsets = [0, 256], sizes = [4, 128], strides = [1, 1]} : vector<4x384xf32> to vector<4x128xf32>
    %88 = arith.mulf %86, %70 : vector<4x128xf32>
    %89 = arith.mulf %85, %84 : vector<4x128xf32>
    %90 = arith.addf %88, %89 : vector<4x128xf32>
    %91 = math.tanh %90 : vector<4x128xf32>
    %92 = arith.mulf %87, %91 : vector<4x128xf32>
    %93 = vector.extract_strided_slice %10 {offsets = [0, 4, 0], sizes = [4, 1, 512], strides = [1, 1, 1]} : vector<4x8x512xf32> to vector<4x1x512xf32>
    %94 = vector.shape_cast %93 : vector<4x1x512xf32> to vector<4x512xf32>
    %cst_17 = arith.constant dense<0.000000e+00> : vector<4x512xf32>
    %95 = tpu.matmul %92, %2, %cst_17 {dimension_numbers = #tpu.dot_dimension_numbers<[1], [0], [0], [1], [0, 0, 1, 1], [], []>} : vector<4x128xf32>, vector<128x512xf32>, vector<4x512xf32> -> vector<4x512xf32>
    %96 = arith.addf %94, %95 : vector<4x512xf32>
    %97 = vector.extract_strided_slice %96 {offsets = [0, 0], sizes = [4, 384], strides = [1, 1]} : vector<4x512xf32> to vector<4x384xf32>
    %98 = arith.negf %97 : vector<4x384xf32>
    %99 = math.exp %98 : vector<4x384xf32>
    %cst_18 = arith.constant 1.000000e+00 : f32
    %100 = vector.broadcast %cst_18 : f32 to vector<4x384xf32>
    %101 = arith.addf %100, %99 : vector<4x384xf32>
    %102 = arith.divf %100, %101 : vector<4x384xf32>
    %103 = vector.extract_strided_slice %96 {offsets = [0, 384], sizes = [4, 128], strides = [1, 1]} : vector<4x512xf32> to vector<4x128xf32>
    %104 = math.tanh %103 : vector<4x128xf32>
    %105 = vector.extract_strided_slice %102 {offsets = [0, 0], sizes = [4, 128], strides = [1, 1]} : vector<4x384xf32> to vector<4x128xf32>
    %106 = vector.extract_strided_slice %102 {offsets = [0, 128], sizes = [4, 128], strides = [1, 1]} : vector<4x384xf32> to vector<4x128xf32>
    %107 = vector.extract_strided_slice %102 {offsets = [0, 256], sizes = [4, 128], strides = [1, 1]} : vector<4x384xf32> to vector<4x128xf32>
    %108 = arith.mulf %106, %90 : vector<4x128xf32>
    %109 = arith.mulf %105, %104 : vector<4x128xf32>
    %110 = arith.addf %108, %109 : vector<4x128xf32>
    %111 = math.tanh %110 : vector<4x128xf32>
    %112 = arith.mulf %107, %111 : vector<4x128xf32>
    %113 = vector.extract_strided_slice %10 {offsets = [0, 5, 0], sizes = [4, 1, 512], strides = [1, 1, 1]} : vector<4x8x512xf32> to vector<4x1x512xf32>
    %114 = vector.shape_cast %113 : vector<4x1x512xf32> to vector<4x512xf32>
    %cst_19 = arith.constant dense<0.000000e+00> : vector<4x512xf32>
    %115 = tpu.matmul %112, %2, %cst_19 {dimension_numbers = #tpu.dot_dimension_numbers<[1], [0], [0], [1], [0, 0, 1, 1], [], []>} : vector<4x128xf32>, vector<128x512xf32>, vector<4x512xf32> -> vector<4x512xf32>
    %116 = arith.addf %114, %115 : vector<4x512xf32>
    %117 = vector.extract_strided_slice %116 {offsets = [0, 0], sizes = [4, 384], strides = [1, 1]} : vector<4x512xf32> to vector<4x384xf32>
    %118 = arith.negf %117 : vector<4x384xf32>
    %119 = math.exp %118 : vector<4x384xf32>
    %cst_20 = arith.constant 1.000000e+00 : f32
    %120 = vector.broadcast %cst_20 : f32 to vector<4x384xf32>
    %121 = arith.addf %120, %119 : vector<4x384xf32>
    %122 = arith.divf %120, %121 : vector<4x384xf32>
    %123 = vector.extract_strided_slice %116 {offsets = [0, 384], sizes = [4, 128], strides = [1, 1]} : vector<4x512xf32> to vector<4x128xf32>
    %124 = math.tanh %123 : vector<4x128xf32>
    %125 = vector.extract_strided_slice %122 {offsets = [0, 0], sizes = [4, 128], strides = [1, 1]} : vector<4x384xf32> to vector<4x128xf32>
    %126 = vector.extract_strided_slice %122 {offsets = [0, 128], sizes = [4, 128], strides = [1, 1]} : vector<4x384xf32> to vector<4x128xf32>
    %127 = vector.extract_strided_slice %122 {offsets = [0, 256], sizes = [4, 128], strides = [1, 1]} : vector<4x384xf32> to vector<4x128xf32>
    %128 = arith.mulf %126, %110 : vector<4x128xf32>
    %129 = arith.mulf %125, %124 : vector<4x128xf32>
    %130 = arith.addf %128, %129 : vector<4x128xf32>
    %131 = math.tanh %130 : vector<4x128xf32>
    %132 = arith.mulf %127, %131 : vector<4x128xf32>
    %133 = vector.extract_strided_slice %10 {offsets = [0, 6, 0], sizes = [4, 1, 512], strides = [1, 1, 1]} : vector<4x8x512xf32> to vector<4x1x512xf32>
    %134 = vector.shape_cast %133 : vector<4x1x512xf32> to vector<4x512xf32>
    %cst_21 = arith.constant dense<0.000000e+00> : vector<4x512xf32>
    %135 = tpu.matmul %132, %2, %cst_21 {dimension_numbers = #tpu.dot_dimension_numbers<[1], [0], [0], [1], [0, 0, 1, 1], [], []>} : vector<4x128xf32>, vector<128x512xf32>, vector<4x512xf32> -> vector<4x512xf32>
    %136 = arith.addf %134, %135 : vector<4x512xf32>
    %137 = vector.extract_strided_slice %136 {offsets = [0, 0], sizes = [4, 384], strides = [1, 1]} : vector<4x512xf32> to vector<4x384xf32>
    %138 = arith.negf %137 : vector<4x384xf32>
    %139 = math.exp %138 : vector<4x384xf32>
    %cst_22 = arith.constant 1.000000e+00 : f32
    %140 = vector.broadcast %cst_22 : f32 to vector<4x384xf32>
    %141 = arith.addf %140, %139 : vector<4x384xf32>
    %142 = arith.divf %140, %141 : vector<4x384xf32>
    %143 = vector.extract_strided_slice %136 {offsets = [0, 384], sizes = [4, 128], strides = [1, 1]} : vector<4x512xf32> to vector<4x128xf32>
    %144 = math.tanh %143 : vector<4x128xf32>
    %145 = vector.extract_strided_slice %142 {offsets = [0, 0], sizes = [4, 128], strides = [1, 1]} : vector<4x384xf32> to vector<4x128xf32>
    %146 = vector.extract_strided_slice %142 {offsets = [0, 128], sizes = [4, 128], strides = [1, 1]} : vector<4x384xf32> to vector<4x128xf32>
    %147 = vector.extract_strided_slice %142 {offsets = [0, 256], sizes = [4, 128], strides = [1, 1]} : vector<4x384xf32> to vector<4x128xf32>
    %148 = arith.mulf %146, %130 : vector<4x128xf32>
    %149 = arith.mulf %145, %144 : vector<4x128xf32>
    %150 = arith.addf %148, %149 : vector<4x128xf32>
    %151 = math.tanh %150 : vector<4x128xf32>
    %152 = arith.mulf %147, %151 : vector<4x128xf32>
    %153 = vector.extract_strided_slice %10 {offsets = [0, 7, 0], sizes = [4, 1, 512], strides = [1, 1, 1]} : vector<4x8x512xf32> to vector<4x1x512xf32>
    %154 = vector.shape_cast %153 : vector<4x1x512xf32> to vector<4x512xf32>
    %cst_23 = arith.constant dense<0.000000e+00> : vector<4x512xf32>
    %155 = tpu.matmul %152, %2, %cst_23 {dimension_numbers = #tpu.dot_dimension_numbers<[1], [0], [0], [1], [0, 0, 1, 1], [], []>} : vector<4x128xf32>, vector<128x512xf32>, vector<4x512xf32> -> vector<4x512xf32>
    %156 = arith.addf %154, %155 : vector<4x512xf32>
    %157 = vector.extract_strided_slice %156 {offsets = [0, 0], sizes = [4, 384], strides = [1, 1]} : vector<4x512xf32> to vector<4x384xf32>
    %158 = arith.negf %157 : vector<4x384xf32>
    %159 = math.exp %158 : vector<4x384xf32>
    %cst_24 = arith.constant 1.000000e+00 : f32
    %160 = vector.broadcast %cst_24 : f32 to vector<4x384xf32>
    %161 = arith.addf %160, %159 : vector<4x384xf32>
    %162 = arith.divf %160, %161 : vector<4x384xf32>
    %163 = vector.extract_strided_slice %156 {offsets = [0, 384], sizes = [4, 128], strides = [1, 1]} : vector<4x512xf32> to vector<4x128xf32>
    %164 = math.tanh %163 : vector<4x128xf32>
    %165 = vector.extract_strided_slice %162 {offsets = [0, 0], sizes = [4, 128], strides = [1, 1]} : vector<4x384xf32> to vector<4x128xf32>
    %166 = vector.extract_strided_slice %162 {offsets = [0, 128], sizes = [4, 128], strides = [1, 1]} : vector<4x384xf32> to vector<4x128xf32>
    %167 = vector.extract_strided_slice %162 {offsets = [0, 256], sizes = [4, 128], strides = [1, 1]} : vector<4x384xf32> to vector<4x128xf32>
    %168 = arith.mulf %166, %150 : vector<4x128xf32>
    %169 = arith.mulf %165, %164 : vector<4x128xf32>
    %170 = arith.addf %168, %169 : vector<4x128xf32>
    %171 = math.tanh %170 : vector<4x128xf32>
    %172 = arith.mulf %167, %171 : vector<4x128xf32>
    %c0_25 = arith.constant 0 : index
    %c0_26 = arith.constant 0 : index
    %173 = vector.load %arg5[%c0_25, %c0_26] : memref<128x1xf32, #tpu.memory_space<vmem>>, vector<128x1xf32>
    %cst_27 = arith.constant dense<0.000000e+00> : vector<4x1xf32>
    %174 = tpu.matmul %172, %173, %cst_27 {dimension_numbers = #tpu.dot_dimension_numbers<[1], [0], [0], [1], [0, 0, 1, 1], [], []>} : vector<4x128xf32>, vector<128x1xf32>, vector<4x1xf32> -> vector<4x1xf32>
    %c0_28 = arith.constant 0 : index
    %c0_29 = arith.constant 0 : index
    %175 = vector.load %arg6[%c0_28, %c0_29] : memref<1x1xf32, #tpu.memory_space<vmem>>, vector<1x1xf32>
    %176 = vector.broadcast %175 : vector<1x1xf32> to vector<4x1xf32>
    %177 = arith.addf %174, %176 : vector<4x1xf32>
    %c0_30 = arith.constant 0 : index
    %c0_31 = arith.constant 0 : index
    %178 = vector.load %arg7[%c0_30, %c0_31] : memref<4x1xf32, #tpu.memory_space<vmem>>, vector<4x1xf32>
    tpu.vector_store %arg7[%c0_30, %c0_31], %177 {strides = array<i32>} : memref<4x1xf32, #tpu.memory_space<vmem>>, vector<4x1xf32>,
    return
  }
  func.func @transform_0(%arg0: i32) -> (i32, i32, i32) {
    %c0_i32 = arith.constant 0 : i32
    %c0_i32_0 = arith.constant 0 : i32
    %c0_i32_1 = arith.constant 0 : i32
    %c0_i32_2 = arith.constant 0 : i32
    return %c0_i32, %c0_i32_0, %c0_i32_1 : i32, i32, i32
  }
  func.func @transform_1(%arg0: i32) -> (i32, i32) {
    %c0_i32 = arith.constant 0 : i32
    %c0_i32_0 = arith.constant 0 : i32
    %c0_i32_1 = arith.constant 0 : i32
    return %c0_i32, %c0_i32_0 : i32, i32
  }
  func.func @transform_2(%arg0: i32) -> (i32, i32) {
    %c0_i32 = arith.constant 0 : i32
    %c0_i32_0 = arith.constant 0 : i32
    %c0_i32_1 = arith.constant 0 : i32
    return %c0_i32, %c0_i32_0 : i32, i32
  }
  func.func @transform_3(%arg0: i32) -> (i32, i32) {
    %c0_i32 = arith.constant 0 : i32
    %c0_i32_0 = arith.constant 0 : i32
    %c0_i32_1 = arith.constant 0 : i32
    return %c0_i32, %c0_i32_0 : i32, i32
  }
  func.func @transform_4(%arg0: i32) -> (i32, i32) {
    %c0_i32 = arith.constant 0 : i32
    %c0_i32_0 = arith.constant 0 : i32
    %c0_i32_1 = arith.constant 0 : i32
    return %c0_i32, %c0_i32_0 : i32, i32
  }
  func.func @transform_5(%arg0: i32) -> (i32, i32) {
    %c0_i32 = arith.constant 0 : i32
    %c0_i32_0 = arith.constant 0 : i32
    %c0_i32_1 = arith.constant 0 : i32
    return %c0_i32, %c0_i32_0 : i32, i32
  }
  func.func @transform_6(%arg0: i32) -> (i32, i32) {
    %c0_i32 = arith.constant 0 : i32
    %c0_i32_0 = arith.constant 0 : i32
    %c0_i32_1 = arith.constant 0 : i32
    return %c0_i32, %c0_i32_0 : i32, i32
  }
}

</mosaic_0001>

<llo_original>
// kernel: tpu_custom_call.1
$region0: #{tpu_custom_call.1}
  #allocation0 [shape = 'u32[]', space=smem, size = 0x4, offset = 0x4, fixed_abs, tag = 'smem constant byte address 0x4 - core index']
  #allocation1 [shape = 'u32[144,128]{1,0:T(1,128)}', space=vmem, size = 0x12000, scoped, tag = 'internal scratch']
  #allocation2 [shape = 'f32[1,1]{1,0:T(1,128)S(1)}', space=vmem, size = 0x200, scoped, tag = 'scoped memory for tpu_custom_call.1']
  %s0 = inlined_call_operand.vmem [shape: f32[4,8,1], index: 0, kind: input, shape index: {}]
  %s1 = inlined_call_operand.vmem [shape: f32[1,512], index: 1, kind: input, shape index: {}]
  %s2 = inlined_call_operand.hbm [shape: f32[128,512], index: 2, kind: input, shape index: {}]
  %s3 = inlined_call_operand.vmem [shape: f32[1,512], index: 3, kind: input, shape index: {}]
  %s4 = inlined_call_operand.vmem [shape: f32[128,1], index: 4, kind: input, shape index: {}]
  %s5 = inlined_call_operand.<no memory space> [shape: f32[1,1], index: 5, kind: input, shape index: {}]
  %s6 = inlined_call_operand.vmem [shape: f32[4,1], index: 6, kind: output, shape index: {}]
  %s7 = sld [smem:[#allocation0]]
  $region38: #{tpu_custom_call.1} parent=0
    _
  %s9 = ssub.s32 1, %s7
  %s10 = scalar_select 0, %s9, %s7
  %v11 = vstv %s5
  %12 = vst [vmem:[#allocation2] sm:$0x1] %v11
  $region1: #{tpu_custom_call.1} parent=0
    #allocation3 [shape = 'u8[262144]{0}', space=vmem, size = 0x40000, scoped, tag = 'input window, operand 2, single buffered']
    #allocation4 [shape = 's32[1]{0}', space=sflag, size = 0x4, scoped, tag = 'scoped memory for tpu_custom_call.1']
    %13 = vsyncpa [#allocation4], 0
    // Predicated region
    $region2: #{tpu_custom_call.1} parent=1 // pred_check
      _
    $region3: #{tpu_custom_call.1} parent=1 // pred_check_branch
      %15 = sbr.rel (0) target = $region5
    $region4: #{tpu_custom_call.1} parent=1 // pred_region
      _
    $region5: #{tpu_custom_call.1} parent=1 // pred_fallthru
      _
    // Predicated region
    $region6: #{tpu_custom_call.1} parent=1 // pred_check
      _
    $region7: #{tpu_custom_call.1} parent=1 // pred_check_branch
      %17 = sbr.rel (0) target = $region9
    $region8: #{tpu_custom_call.1} parent=1 // pred_region
      _
    $region9: #{tpu_custom_call.1} parent=1 // pred_fallthru
      _
    // Predicated region
    $region10: #{tpu_custom_call.1} parent=1 // pred_check
      _
    $region11: #{tpu_custom_call.1} parent=1 // pred_check_branch
      %19 = sbr.rel (0) target = $region13
    $region12: #{tpu_custom_call.1} parent=1 // pred_region
      %s21 = ssub.s32 8192, 8192
      %22 = vsyncadd [#allocation4], %s21
      %s23 = sshll.u32 [#allocation3], 4
      %s24 = int_to_ptr.vmem [resolvable:$true] %s23
      %29 = dma.hbm_to_vmem [thread:$0]  %s2, 8192, %s24, [#allocation4], 512, 512, 32
    $region13: #{tpu_custom_call.1} parent=1 // pred_fallthru
      _
    // Predicated region
    $region14: #{tpu_custom_call.1} parent=1 // pred_check
      _
    $region15: #{tpu_custom_call.1} parent=1 // pred_check_branch
      %31 = sbr.rel (0) target = $region17
    $region16: #{tpu_custom_call.1} parent=1 // pred_region
      _
    $region17: #{tpu_custom_call.1} parent=1 // pred_fallthru
      _
    // Predicated region
    $region18: #{tpu_custom_call.1} parent=1 // pred_check
      _
    $region19: #{tpu_custom_call.1} parent=1 // pred_check_branch
      %33 = sbr.rel (0) target = $region21
    $region20: #{tpu_custom_call.1} parent=1 // pred_region
      _
    $region21: #{tpu_custom_call.1} parent=1 // pred_fallthru
      _
    // Predicated region
    $region22: #{tpu_custom_call.1} parent=1 // pred_check
      _
    $region23: #{tpu_custom_call.1} parent=1 // pred_check_branch
      %35 = sbr.rel (0) target = $region25
    $region24: #{tpu_custom_call.1} parent=1 // pred_region
      _
    $region25: #{tpu_custom_call.1} parent=1 // pred_fallthru
      _
    // Predicated region
    $region26: #{tpu_custom_call.1} parent=1 // pred_check
      _
    $region27: #{tpu_custom_call.1} parent=1 // pred_check_branch
      %37 = sbr.rel (0) target = $region29
    $region28: #{tpu_custom_call.1} parent=1 // pred_region
      %38 = dma.done [#allocation4], 8192
    $region29: #{tpu_custom_call.1} parent=1 // pred_fallthru
      _
    %v39 = vld [vmem:[%s0] sm:$0xff]
    %v40 = vld [vmem:[%s0 + $0x8] sm:$0xff]
    %v41 = vld [vmem:[%s0 + $0x10] sm:$0xff]
    %v42 = vld [vmem:[%s0 + $0x18] sm:$0xff]
    %v43 = vld [vmem:[%s1] sm:$0xf]
    %v44 = vld [vmem:[#allocation3] sm:$0xff]
    %v45 = vld [vmem:[#allocation3 + $0x8] sm:$0xff]
    %v46 = vld [vmem:[#allocation3 + $0x10] sm:$0xff]
    %v47 = vld [vmem:[#allocation3 + $0x18] sm:$0xff]
    %v48 = vld [vmem:[#allocation3 + $0x20] sm:$0xff]
    %v49 = vld [vmem:[#allocation3 + $0x28] sm:$0xff]
    %v50 = vld [vmem:[#allocation3 + $0x30] sm:$0xff]
    %v51 = vld [vmem:[#allocation3 + $0x38] sm:$0xff]
    %v52 = vld [vmem:[#allocation3 + $0x40] sm:$0xff]
    %v53 = vld [vmem:[#allocation3 + $0x48] sm:$0xff]
    %v54 = vld [vmem:[#allocation3 + $0x50] sm:$0xff]
    %v55 = vld [vmem:[#allocation3 + $0x58] sm:$0xff]
    %v56 = vld [vmem:[#allocation3 + $0x60] sm:$0xff]
    %v57 = vld [vmem:[#allocation3 + $0x68] sm:$0xff]
    %v58 = vld [vmem:[#allocation3 + $0x70] sm:$0xff]
    %v59 = vld [vmem:[#allocation3 + $0x78] sm:$0xff]
    %v60 = vld [vmem:[#allocation3 + $0x80] sm:$0xff]
    %v61 = vld [vmem:[#allocation3 + $0x88] sm:$0xff]
    %v62 = vld [vmem:[#allocation3 + $0x90] sm:$0xff]
    %v63 = vld [vmem:[#allocation3 + $0x98] sm:$0xff]
    %v64 = vld [vmem:[#allocation3 + $0xa0] sm:$0xff]
    %v65 = vld [vmem:[#allocation3 + $0xa8] sm:$0xff]
    %v66 = vld [vmem:[#allocation3 + $0xb0] sm:$0xff]
    %v67 = vld [vmem:[#allocation3 + $0xb8] sm:$0xff]
    %v68 = vld [vmem:[#allocation3 + $0xc0] sm:$0xff]
    %v69 = vld [vmem:[#allocation3 + $0xc8] sm:$0xff]
    %v70 = vld [vmem:[#allocation3 + $0xd0] sm:$0xff]
    %v71 = vld [vmem:[#allocation3 + $0xd8] sm:$0xff]
    %v72 = vld [vmem:[#allocation3 + $0xe0] sm:$0xff]
    %v73 = vld [vmem:[#allocation3 + $0xe8] sm:$0xff]
    %v74 = vld [vmem:[#allocation3 + $0xf0] sm:$0xff]
    %v75 = vld [vmem:[#allocation3 + $0xf8] sm:$0xff]
    %v76 = vld [vmem:[#allocation3 + $0x100] sm:$0xff]
    %v77 = vld [vmem:[#allocation3 + $0x108] sm:$0xff]
    %v78 = vld [vmem:[#allocation3 + $0x110] sm:$0xff]
    %v79 = vld [vmem:[#allocation3 + $0x118] sm:$0xff]
    %v80 = vld [vmem:[#allocation3 + $0x120] sm:$0xff]
    %v81 = vld [vmem:[#allocation3 + $0x128] sm:$0xff]
    %v82 = vld [vmem:[#allocation3 + $0x130] sm:$0xff]
    %v83 = vld [vmem:[#allocation3 + $0x138] sm:$0xff]
    %v84 = vld [vmem:[#allocation3 + $0x140] sm:$0xff]
    %v85 = vld [vmem:[#allocation3 + $0x148] sm:$0xff]
    %v86 = vld [vmem:[#allocation3 + $0x150] sm:$0xff]
    %v87 = vld [vmem:[#allocation3 + $0x158] sm:$0xff]
    %v88 = vld [vmem:[#allocation3 + $0x160] sm:$0xff]
    %v89 = vld [vmem:[#allocation3 + $0x168] sm:$0xff]
    %v90 = vld [vmem:[#allocation3 + $0x170] sm:$0xff]
    %v91 = vld [vmem:[#allocation3 + $0x178] sm:$0xff]
    %v92 = vld [vmem:[#allocation3 + $0x180] sm:$0xff]
    %v93 = vld [vmem:[#allocation3 + $0x188] sm:$0xff]
    %v94 = vld [vmem:[#allocation3 + $0x190] sm:$0xff]
    %v95 = vld [vmem:[#allocation3 + $0x198] sm:$0xff]
    %v96 = vld [vmem:[#allocation3 + $0x1a0] sm:$0xff]
    %v97 = vld [vmem:[#allocation3 + $0x1a8] sm:$0xff]
    %v98 = vld [vmem:[#allocation3 + $0x1b0] sm:$0xff]
    %v99 = vld [vmem:[#allocation3 + $0x1b8] sm:$0xff]
    %v100 = vld [vmem:[#allocation3 + $0x1c0] sm:$0xff]
    %v101 = vld [vmem:[#allocation3 + $0x1c8] sm:$0xff]
    %v102 = vld [vmem:[#allocation3 + $0x1d0] sm:$0xff]
    %v103 = vld [vmem:[#allocation3 + $0x1d8] sm:$0xff]
    %v104 = vld [vmem:[#allocation3 + $0x1e0] sm:$0xff]
    %v105 = vld [vmem:[#allocation3 + $0x1e8] sm:$0xff]
    %v106 = vld [vmem:[#allocation3 + $0x1f0] sm:$0xff]
    %v107 = vld [vmem:[#allocation3 + $0x1f8] sm:$0xff]
    %v108 = vld [vmem:[%s3] sm:$0xf]
    %110 = vset.pattern.permute.xlu0 0
    %111 = vperm.xlu0 %110, %v39
    %v112 = vpop.permute.xlu0 %111
    %115 = vset.pattern.permute.xlu0 0
    %116 = vperm.xlu0 %115, %v40
    %v117 = vpop.permute.xlu0 %116
    %120 = vset.pattern.permute.xlu0 0
    %121 = vperm.xlu0 %120, %v41
    %v122 = vpop.permute.xlu0 %121
    %125 = vset.pattern.permute.xlu0 0
    %126 = vperm.xlu0 %125, %v42
    %v127 = vpop.permute.xlu0 %126
    %v130 = vlaneseq
    %v131 = vshrl.u32 %v130, 7
    %v132 = vsub.s32 0, %v131
    %v133 = vrot.slane %v43, %v132
    %v134 = vlaneseq
    %v135 = vshrl.u32 %v134, 7
    %v136 = vsub.s32 1, %v135
    %v137 = vrot.slane %v43, %v136
    %v138 = vlaneseq
    %v139 = vshrl.u32 %v138, 7
    %v140 = vsub.s32 2, %v139
    %v141 = vrot.slane %v43, %v140
    %v142 = vlaneseq
    %v143 = vshrl.u32 %v142, 7
    %v144 = vsub.s32 3, %v143
    %v145 = vrot.slane %v43, %v144
    %v150 = vmul.f32 %v112, %v133
    %v151 = vmul.f32 %v112, %v137
    %v152 = vmul.f32 %v112, %v141
    %v153 = vmul.f32 %v112, %v145
    %v154 = vmul.f32 %v117, %v133
    %v155 = vmul.f32 %v117, %v137
    %v156 = vmul.f32 %v117, %v141
    %v157 = vmul.f32 %v117, %v145
    %v158 = vmul.f32 %v122, %v133
    %v159 = vmul.f32 %v122, %v137
    %v160 = vmul.f32 %v122, %v141
    %v161 = vmul.f32 %v122, %v145
    %v162 = vmul.f32 %v127, %v133
    %v163 = vmul.f32 %v127, %v137
    %v164 = vmul.f32 %v127, %v141
    %v165 = vmul.f32 %v127, %v145
    %v167 = vlaneseq
    %v168 = vshrl.u32 %v167, 7
    %v169 = vsub.s32 0, %v168
    %v170 = vrot.slane %v108, %v169
    %v171 = vlaneseq
    %v172 = vshrl.u32 %v171, 7
    %v173 = vsub.s32 1, %v172
    %v174 = vrot.slane %v108, %v173
    %v175 = vlaneseq
    %v176 = vshrl.u32 %v175, 7
    %v177 = vsub.s32 2, %v176
    %v178 = vrot.slane %v108, %v177
    %v179 = vlaneseq
    %v180 = vshrl.u32 %v179, 7
    %v181 = vsub.s32 3, %v180
    %v182 = vrot.slane %v108, %v181
    %v187 = vadd.f32 %v150, %v170
    %v188 = vadd.f32 %v151, %v174
    %v189 = vadd.f32 %v152, %v178
    %v190 = vadd.f32 %v153, %v182
    %v191 = vadd.f32 %v154, %v170
    %v192 = vadd.f32 %v155, %v174
    %v193 = vadd.f32 %v156, %v178
    %v194 = vadd.f32 %v157, %v182
    %v195 = vadd.f32 %v158, %v170
    %v196 = vadd.f32 %v159, %v174
    %v197 = vadd.f32 %v160, %v178
    %v198 = vadd.f32 %v161, %v182
    %v199 = vadd.f32 %v162, %v170
    %v200 = vadd.f32 %v163, %v174
    %v201 = vadd.f32 %v164, %v178
    %v202 = vadd.f32 %v165, %v182
    %203 = vmatprep.subr.mxu0 %v105
    %204 = vmatpush1.msra.mxu0 %v104
    %205 = vmatprep.subr.mxu0 %v101
    %206 = vmatpush1.msra.mxu0 %v100
    %207 = vmatprep.subr.mxu0 %v97
    %208 = vmatpush1.msra.mxu0 %v96
    %209 = vmatprep.subr.mxu0 %v93
    %210 = vmatpush1.msra.mxu0 %v92
    %211 = vmatprep.subr.mxu0 %v89
    %212 = vmatpush1.msra.mxu0 %v88
    %213 = vmatprep.subr.mxu0 %v85
    %214 = vmatpush1.msra.mxu0 %v84
    %215 = vmatprep.subr.mxu0 %v81
    %216 = vmatpush1.msra.mxu0 %v80
    %217 = vmatprep.subr.mxu0 %v77
    %218 = vmatpush1.msra.mxu0 %v76
    %219 = vmatprep.subr.mxu0 %v73
    %220 = vmatpush1.msra.mxu0 %v72
    %221 = vmatprep.subr.mxu0 %v69
    %222 = vmatpush1.msra.mxu0 %v68
    %223 = vmatprep.subr.mxu0 %v65
    %224 = vmatpush1.msra.mxu0 %v64
    %225 = vmatprep.subr.mxu0 %v61
    %226 = vmatpush1.msra.mxu0 %v60
    %227 = vmatprep.subr.mxu0 %v57
    %228 = vmatpush1.msra.mxu0 %v56
    %229 = vmatprep.subr.mxu0 %v53
    %230 = vmatpush1.msra.mxu0 %v52
    %231 = vmatprep.subr.mxu0 %v49
    %232 = vmatpush1.msra.mxu0 %v48
    %233 = vmatprep.subr.mxu0 %v45
    %234 = vmatpush1.msra.mxu0 %v44
    %235 = vmatprep.subr.mxu0 0.0
    %236 = vmatpush2.msra.mxu0 0.0
    %237 = vmatprep.subr.mxu0 0.0
    %238 = vmatpush2.msra.mxu0 0.0
    %239 = vmatprep.subr.mxu0 0.0
    %240 = vmatpush2.msra.mxu0 0.0
    %241 = vmatprep.subr.mxu0 0.0
    %242 = vmatpush2.msra.mxu0 0.0
    %243 = vmatprep.subr.mxu0 0.0
    %244 = vmatpush2.msra.mxu0 0.0
    %245 = vmatprep.subr.mxu0 0.0
    %246 = vmatpush2.msra.mxu0 0.0
    %247 = vmatprep.subr.mxu0 0.0
    %248 = vmatpush2.msra.mxu0 0.0
    %249 = vmatprep.subr.mxu0 0.0
    %250 = vmatpush2.msra.mxu0 0.0
    %251 = vmatprep.subr.mxu0 0.0
    %252 = vmatpush2.msra.mxu0 0.0
    %253 = vmatprep.subr.mxu0 0.0
    %254 = vmatpush2.msra.mxu0 0.0
    %255 = vmatprep.subr.mxu0 0.0
    %256 = vmatpush2.msra.mxu0 0.0
    %257 = vmatprep.subr.mxu0 0.0
    %258 = vmatpush2.msra.mxu0 0.0
    %259 = vmatprep.subr.mxu0 0.0
    %260 = vmatpush2.msra.mxu0 0.0
    %261 = vmatprep.subr.mxu0 0.0
    %262 = vmatpush2.msra.mxu0 0.0
    %263 = vmatprep.subr.mxu0 0.0
    %264 = vmatpush2.msra.mxu0 0.0
    %265 = vmatprep.subr.mxu0 0.0
    %266 = vmatpush2.msra.mxu0 0.0
    %267 = vmatprep.mubr.f32.mxu0 0.0
    %268 = vmatmul.mubr.f32.gmra.mxu0 0.0
    %v269 = vpop.f32.mrf.mxu0
    %v270 = vadd.f32 0.0, %v269
    %v271 = vpop.f32.mrf.mxu0
    %v272 = vadd.f32 0.0, %v271
    %273 = vdwg.mxu0
    %274 = vmatprep.subr.mxu0 %v107
    %275 = vmatpush1.msra.mxu0 %v106
    %276 = vmatprep.subr.mxu0 %v103
    %277 = vmatpush1.msra.mxu0 %v102
    %278 = vmatprep.subr.mxu0 %v99
    %279 = vmatpush1.msra.mxu0 %v98
    %280 = vmatprep.subr.mxu0 %v95
    %281 = vmatpush1.msra.mxu0 %v94
    %282 = vmatprep.subr.mxu0 %v91
    %283 = vmatpush1.msra.mxu0 %v90
    %284 = vmatprep.subr.mxu0 %v87
    %285 = vmatpush1.msra.mxu0 %v86
    %286 = vmatprep.subr.mxu0 %v83
    %287 = vmatpush1.msra.mxu0 %v82
    %288 = vmatprep.subr.mxu0 %v79
    %289 = vmatpush1.msra.mxu0 %v78
    %290 = vmatprep.subr.mxu0 %v75
    %291 = vmatpush1.msra.mxu0 %v74
    %292 = vmatprep.subr.mxu0 %v71
    %293 = vmatpush1.msra.mxu0 %v70
    %294 = vmatprep.subr.mxu0 %v67
    %295 = vmatpush1.msra.mxu0 %v66
    %296 = vmatprep.subr.mxu0 %v63
    %297 = vmatpush1.msra.mxu0 %v62
    %298 = vmatprep.subr.mxu0 %v59
    %299 = vmatpush1.msra.mxu0 %v58
    %300 = vmatprep.subr.mxu0 %v55
    %301 = vmatpush1.msra.mxu0 %v54
    %302 = vmatprep.subr.mxu0 %v51
    %303 = vmatpush1.msra.mxu0 %v50
    %304 = vmatprep.subr.mxu0 %v47
    %305 = vmatpush1.msra.mxu0 %v46
    %306 = vmatprep.subr.mxu0 0.0
    %307 = vmatpush2.msra.mxu0 0.0
    %308 = vmatprep.subr.mxu0 0.0
    %309 = vmatpush2.msra.mxu0 0.0
    %310 = vmatprep.subr.mxu0 0.0
    %311 = vmatpush2.msra.mxu0 0.0
    %312 = vmatprep.subr.mxu0 0.0
    %313 = vmatpush2.msra.mxu0 0.0
    %314 = vmatprep.subr.mxu0 0.0
    %315 = vmatpush2.msra.mxu0 0.0
    %316 = vmatprep.subr.mxu0 0.0
    %317 = vmatpush2.msra.mxu0 0.0
    %318 = vmatprep.subr.mxu0 0.0
    %319 = vmatpush2.msra.mxu0 0.0
    %320 = vmatprep.subr.mxu0 0.0
    %321 = vmatpush2.msra.mxu0 0.0
    %322 = vmatprep.subr.mxu0 0.0
    %323 = vmatpush2.msra.mxu0 0.0
    %324 = vmatprep.subr.mxu0 0.0
    %325 = vmatpush2.msra.mxu0 0.0
    %326 = vmatprep.subr.mxu0 0.0
    %327 = vmatpush2.msra.mxu0 0.0
    %328 = vmatprep.subr.mxu0 0.0
    %329 = vmatpush2.msra.mxu0 0.0
    %330 = vmatprep.subr.mxu0 0.0
    %331 = vmatpush2.msra.mxu0 0.0
    %332 = vmatprep.subr.mxu0 0.0
    %333 = vmatpush2.msra.mxu0 0.0
    %334 = vmatprep.subr.mxu0 0.0
    %335 = vmatpush2.msra.mxu0 0.0
    %336 = vmatprep.subr.mxu0 0.0
    %337 = vmatpush2.msra.mxu0 0.0
    %338 = vmatprep.mubr.f32.mxu0 0.0
    %339 = vmatmul.mubr.f32.gmra.mxu0 0.0
    %v340 = vpop.f32.mrf.mxu0
    %v341 = vadd.f32 0.0, %v340
    %v342 = vpop.f32.mrf.mxu0
    %v343 = vadd.f32 0.0, %v342
    %344 = vdwg.mxu0
    %v349 = vrot.slane %v270, 1
    %v350 = vrot.slane %v272, 1
    %v351 = vrot.slane %v341, 1
    %v352 = vrot.slane %v343, 1
    %v353 = vrot.slane %v270, 2
    %v354 = vrot.slane %v272, 2
    %v355 = vrot.slane %v341, 2
    %v356 = vrot.slane %v343, 2
    %v357 = vrot.slane %v270, 3
    %v358 = vrot.slane %v272, 3
    %v359 = vrot.slane %v341, 3
    %v360 = vrot.slane %v343, 3
    %v377 = vadd.f32 %v187, %v270
    %v378 = vadd.f32 %v188, %v272
    %v379 = vadd.f32 %v189, %v341
    %v380 = vadd.f32 %v190, %v343
    %v381 = vadd.f32 %v191, %v349
    %v382 = vadd.f32 %v192, %v350
    %v383 = vadd.f32 %v193, %v351
    %v384 = vadd.f32 %v194, %v352
    %v385 = vadd.f32 %v195, %v353
    %v386 = vadd.f32 %v196, %v354
    %v387 = vadd.f32 %v197, %v355
    %v388 = vadd.f32 %v198, %v356
    %v389 = vadd.f32 %v199, %v357
    %v390 = vadd.f32 %v200, %v358
    %v391 = vadd.f32 %v201, %v359
    %v392 = vadd.f32 %v202, %v360
    %v393 = vxor.u32 %v377, 2147483648
    %v394 = vxor.u32 %v378, 2147483648
    %v395 = vxor.u32 %v379, 2147483648
    %v396 = vxor.u32 %v381, 2147483648
    %v397 = vxor.u32 %v382, 2147483648
    %v398 = vxor.u32 %v383, 2147483648
    %v399 = vxor.u32 %v385, 2147483648
    %v400 = vxor.u32 %v386, 2147483648
    %v401 = vxor.u32 %v387, 2147483648
    %v402 = vxor.u32 %v389, 2147483648
    %v403 = vxor.u32 %v390, 2147483648
    %v404 = vxor.u32 %v391, 2147483648
    %v405 = vmul.f32 %v393, 1.442695
    %v406 = vpow.pop %v405
    %v407 = vmul.f32 %v394, 1.442695
    %v408 = vpow.pop %v407
    %v409 = vmul.f32 %v395, 1.442695
    %v410 = vpow.pop %v409
    %v411 = vmul.f32 %v396, 1.442695
    %v412 = vpow.pop %v411
    %v413 = vmul.f32 %v397, 1.442695
    %v414 = vpow.pop %v413
    %v415 = vmul.f32 %v398, 1.442695
    %v416 = vpow.pop %v415
    %v417 = vmul.f32 %v399, 1.442695
    %v418 = vpow.pop %v417
    %v419 = vmul.f32 %v400, 1.442695
    %v420 = vpow.pop %v419
    %v421 = vmul.f32 %v401, 1.442695
    %v422 = vpow.pop %v421
    %v423 = vmul.f32 %v402, 1.442695
    %v424 = vpow.pop %v423
    %v425 = vmul.f32 %v403, 1.442695
    %v426 = vpow.pop %v425
    %v427 = vmul.f32 %v404, 1.442695
    %v428 = vpow.pop %v427
    %v429 = vadd.f32 %v406, 1.0
    %v430 = vadd.f32 %v408, 1.0
    %v431 = vadd.f32 %v410, 1.0
    %v432 = vadd.f32 %v412, 1.0
    %v433 = vadd.f32 %v414, 1.0
    %v434 = vadd.f32 %v416, 1.0
    %v435 = vadd.f32 %v418, 1.0
    %v436 = vadd.f32 %v420, 1.0
    %v437 = vadd.f32 %v422, 1.0
    %v438 = vadd.f32 %v424, 1.0
    %v439 = vadd.f32 %v426, 1.0
    %v440 = vadd.f32 %v428, 1.0
    %v441 = vrcp.pop %v429
    %v442 = vmul.f32 1.0, %v441
    %v443 = vrcp.pop %v430
    %v444 = vmul.f32 1.0, %v443
    %v445 = vrcp.pop %v431
    %v446 = vmul.f32 1.0, %v445
    %v447 = vrcp.pop %v432
    %v448 = vmul.f32 1.0, %v447
    %v449 = vrcp.pop %v433
    %v450 = vmul.f32 1.0, %v449
    %v451 = vrcp.pop %v434
    %v452 = vmul.f32 1.0, %v451
    %v453 = vrcp.pop %v435
    %v454 = vmul.f32 1.0, %v453
    %v455 = vrcp.pop %v436
    %v456 = vmul.f32 1.0, %v455
    %v457 = vrcp.pop %v437
    %v458 = vmul.f32 1.0, %v457
    %v459 = vrcp.pop %v438
    %v460 = vmul.f32 1.0, %v459
    %v461 = vrcp.pop %v439
    %v462 = vmul.f32 1.0, %v461
    %v463 = vrcp.pop %v440
    %v464 = vmul.f32 1.0, %v463
    %v465 = vtanh.pop %v380
    %v466 = vtanh.pop %v384
    %v467 = vtanh.pop %v388
    %v468 = vtanh.pop %v392
    %v469 = vmul.f32 %v444, 0.0
    %v470 = vmul.f32 %v450, 0.0
    %v471 = vmul.f32 %v456, 0.0
    %v472 = vmul.f32 %v462, 0.0
    %v473 = vmul.f32 %v442, %v465
    %v474 = vmul.f32 %v448, %v466
    %v475 = vmul.f32 %v454, %v467
    %v476 = vmul.f32 %v460, %v468
    %v477 = vadd.f32 %v469, %v473
    %v478 = vadd.f32 %v470, %v474
    %v479 = vadd.f32 %v471, %v475
    %v480 = vadd.f32 %v472, %v476
    %v481 = vtanh.pop %v477
    %v482 = vtanh.pop %v478
    %v483 = vtanh.pop %v479
    %v484 = vtanh.pop %v480
    %v485 = vmul.f32 %v446, %v481
    %v486 = vmul.f32 %v452, %v482
    %v487 = vmul.f32 %v458, %v483
    %v488 = vmul.f32 %v464, %v484
    %v493 = vrot.slane %v486, 7
    %vm494 = vcmask 1041409
    %v495 = vsel %vm494, %v493, %v485
    %v496 = vrot.slane %v487, 6
    %vm497 = vcmask 1042434
    %v498 = vsel %vm497, %v496, %v495
    %v499 = vrot.slane %v488, 5
    %vm500 = vcmask 1043459
    %v501 = vsel %vm500, %v499, %v498
    %503 = vmatprep.subr.mxu0 %v105
    %504 = vmatpush1.msra.mxu0 %v104
    %505 = vmatprep.subr.mxu0 %v101
    %506 = vmatpush1.msra.mxu0 %v100
    %507 = vmatprep.subr.mxu0 %v97
    %508 = vmatpush1.msra.mxu0 %v96
    %509 = vmatprep.subr.mxu0 %v93
    %510 = vmatpush1.msra.mxu0 %v92
    %511 = vmatprep.subr.mxu0 %v89
    %512 = vmatpush1.msra.mxu0 %v88
    %513 = vmatprep.subr.mxu0 %v85
    %514 = vmatpush1.msra.mxu0 %v84
    %515 = vmatprep.subr.mxu0 %v81
    %516 = vmatpush1.msra.mxu0 %v80
    %517 = vmatprep.subr.mxu0 %v77
    %518 = vmatpush1.msra.mxu0 %v76
    %519 = vmatprep.subr.mxu0 %v73
    %520 = vmatpush1.msra.mxu0 %v72
    %521 = vmatprep.subr.mxu0 %v69
    %522 = vmatpush1.msra.mxu0 %v68
    %523 = vmatprep.subr.mxu0 %v65
    %524 = vmatpush1.msra.mxu0 %v64
    %525 = vmatprep.subr.mxu0 %v61
    %526 = vmatpush1.msra.mxu0 %v60
    %527 = vmatprep.subr.mxu0 %v57
    %528 = vmatpush1.msra.mxu0 %v56
    %529 = vmatprep.subr.mxu0 %v53
    %530 = vmatpush1.msra.mxu0 %v52
    %531 = vmatprep.subr.mxu0 %v49
    %532 = vmatpush1.msra.mxu0 %v48
    %533 = vmatprep.subr.mxu0 %v45
    %534 = vmatpush1.msra.mxu0 %v44
    %535 = vmatprep.subr.mxu0 0.0
    %536 = vmatpush2.msra.mxu0 0.0
    %537 = vmatprep.subr.mxu0 0.0
    %538 = vmatpush2.msra.mxu0 0.0
    %539 = vmatprep.subr.mxu0 0.0
    %540 = vmatpush2.msra.mxu0 0.0
    %541 = vmatprep.subr.mxu0 0.0
    %542 = vmatpush2.msra.mxu0 0.0
    %543 = vmatprep.subr.mxu0 0.0
    %544 = vmatpush2.msra.mxu0 0.0
    %545 = vmatprep.subr.mxu0 0.0
    %546 = vmatpush2.msra.mxu0 0.0
    %547 = vmatprep.subr.mxu0 0.0
    %548 = vmatpush2.msra.mxu0 0.0
    %549 = vmatprep.subr.mxu0 0.0
    %550 = vmatpush2.msra.mxu0 0.0
    %551 = vmatprep.subr.mxu0 0.0
    %552 = vmatpush2.msra.mxu0 0.0
    %553 = vmatprep.subr.mxu0 0.0
    %554 = vmatpush2.msra.mxu0 0.0
    %555 = vmatprep.subr.mxu0 0.0
    %556 = vmatpush2.msra.mxu0 0.0
    %557 = vmatprep.subr.mxu0 0.0
    %558 = vmatpush2.msra.mxu0 0.0
    %559 = vmatprep.subr.mxu0 0.0
    %560 = vmatpush2.msra.mxu0 0.0
    %561 = vmatprep.subr.mxu0 0.0
    %562 = vmatpush2.msra.mxu0 0.0
    %563 = vmatprep.subr.mxu0 0.0
    %564 = vmatpush2.msra.mxu0 0.0
    %565 = vmatprep.subr.mxu0 0.0
    %566 = vmatpush2.msra.mxu0 0.0
    %567 = vmatprep.mubr.f32.mxu0 0.0
    %568 = vmatmul.mubr.f32.gmra.mxu0 %v501
    %v569 = vpop.f32.mrf.mxu0
    %v570 = vadd.f32 0.0, %v569
    %v571 = vpop.f32.mrf.mxu0
    %v572 = vadd.f32 0.0, %v571
    %573 = vdwg.mxu0
    %574 = vmatprep.subr.mxu0 %v107
    %575 = vmatpush1.msra.mxu0 %v106
    %576 = vmatprep.subr.mxu0 %v103
    %577 = vmatpush1.msra.mxu0 %v102
    %578 = vmatprep.subr.mxu0 %v99
    %579 = vmatpush1.msra.mxu0 %v98
    %580 = vmatprep.subr.mxu0 %v95
    %581 = vmatpush1.msra.mxu0 %v94
    %582 = vmatprep.subr.mxu0 %v91
    %583 = vmatpush1.msra.mxu0 %v90
    %584 = vmatprep.subr.mxu0 %v87
    %585 = vmatpush1.msra.mxu0 %v86
    %586 = vmatprep.subr.mxu0 %v83
    %587 = vmatpush1.msra.mxu0 %v82
    %588 = vmatprep.subr.mxu0 %v79
    %589 = vmatpush1.msra.mxu0 %v78
    %590 = vmatprep.subr.mxu0 %v75
    %591 = vmatpush1.msra.mxu0 %v74
    %592 = vmatprep.subr.mxu0 %v71
    %593 = vmatpush1.msra.mxu0 %v70
    %594 = vmatprep.subr.mxu0 %v67
    %595 = vmatpush1.msra.mxu0 %v66
    %596 = vmatprep.subr.mxu0 %v63
    %597 = vmatpush1.msra.mxu0 %v62
    %598 = vmatprep.subr.mxu0 %v59
    %599 = vmatpush1.msra.mxu0 %v58
    %600 = vmatprep.subr.mxu0 %v55
    %601 = vmatpush1.msra.mxu0 %v54
    %602 = vmatprep.subr.mxu0 %v51
    %603 = vmatpush1.msra.mxu0 %v50
    %604 = vmatprep.subr.mxu0 %v47
    %605 = vmatpush1.msra.mxu0 %v46
    %606 = vmatprep.subr.mxu0 0.0
    %607 = vmatpush2.msra.mxu0 0.0
    %608 = vmatprep.subr.mxu0 0.0
    %609 = vmatpush2.msra.mxu0 0.0
    %610 = vmatprep.subr.mxu0 0.0
    %611 = vmatpush2.msra.mxu0 0.0
    %612 = vmatprep.subr.mxu0 0.0
    %613 = vmatpush2.msra.mxu0 0.0
    %614 = vmatprep.subr.mxu0 0.0
    %615 = vmatpush2.msra.mxu0 0.0
    %616 = vmatprep.subr.mxu0 0.0
    %617 = vmatpush2.msra.mxu0 0.0
    %618 = vmatprep.subr.mxu0 0.0
    %619 = vmatpush2.msra.mxu0 0.0
    %620 = vmatprep.subr.mxu0 0.0
    %621 = vmatpush2.msra.mxu0 0.0
    %622 = vmatprep.subr.mxu0 0.0
    %623 = vmatpush2.msra.mxu0 0.0
    %624 = vmatprep.subr.mxu0 0.0
    %625 = vmatpush2.msra.mxu0 0.0
    %626 = vmatprep.subr.mxu0 0.0
    %627 = vmatpush2.msra.mxu0 0.0
    %628 = vmatprep.subr.mxu0 0.0
    %629 = vmatpush2.msra.mxu0 0.0
    %630 = vmatprep.subr.mxu0 0.0
    %631 = vmatpush2.msra.mxu0 0.0
    %632 = vmatprep.subr.mxu0 0.0
    %633 = vmatpush2.msra.mxu0 0.0
    %634 = vmatprep.subr.mxu0 0.0
    %635 = vmatpush2.msra.mxu0 0.0
    %636 = vmatprep.subr.mxu0 0.0
    %637 = vmatpush2.msra.mxu0 0.0
    %638 = vmatprep.mubr.f32.mxu0 0.0
    %639 = vmatmul.mubr.f32.gmra.mxu0 %v501
    %v640 = vpop.f32.mrf.mxu0
    %v641 = vadd.f32 0.0, %v640
    %v642 = vpop.f32.mrf.mxu0
    %v643 = vadd.f32 0.0, %v642
    %644 = vdwg.mxu0
    %v649 = vrot.slane %v570, 7
    %v650 = vrot.slane %v572, 7
    %v651 = vrot.slane %v641, 7
    %v652 = vrot.slane %v643, 7
    %v653 = vrot.slane %v570, 1
    %v654 = vrot.slane %v572, 1
    %v655 = vrot.slane %v641, 1
    %v656 = vrot.slane %v643, 1
    %v657 = vrot.slane %v570, 2
    %v658 = vrot.slane %v572, 2
    %v659 = vrot.slane %v641, 2
    %v660 = vrot.slane %v643, 2
    %v677 = vadd.f32 %v187, %v649
    %v678 = vadd.f32 %v188, %v650
    %v679 = vadd.f32 %v189, %v651
    %v680 = vadd.f32 %v190, %v652
    %v681 = vadd.f32 %v191, %v570
    %v682 = vadd.f32 %v192, %v572
    %v683 = vadd.f32 %v193, %v641
    %v684 = vadd.f32 %v194, %v643
    %v685 = vadd.f32 %v195, %v653
    %v686 = vadd.f32 %v196, %v654
    %v687 = vadd.f32 %v197, %v655
    %v688 = vadd.f32 %v198, %v656
    %v689 = vadd.f32 %v199, %v657
    %v690 = vadd.f32 %v200, %v658
    %v691 = vadd.f32 %v201, %v659
    %v692 = vadd.f32 %v202, %v660
    %v693 = vxor.u32 %v677, 2147483648
    %v694 = vxor.u32 %v678, 2147483648
    %v695 = vxor.u32 %v679, 2147483648
    %v696 = vxor.u32 %v681, 2147483648
    %v697 = vxor.u32 %v682, 2147483648
    %v698 = vxor.u32 %v683, 2147483648
    %v699 = vxor.u32 %v685, 2147483648
    %v700 = vxor.u32 %v686, 2147483648
    %v701 = vxor.u32 %v687, 2147483648
    %v702 = vxor.u32 %v689, 2147483648
    %v703 = vxor.u32 %v690, 2147483648
    %v704 = vxor.u32 %v691, 2147483648
    %v705 = vmul.f32 %v693, 1.442695
    %v706 = vpow.pop %v705
    %v707 = vmul.f32 %v694, 1.442695
    %v708 = vpow.pop %v707
    %v709 = vmul.f32 %v695, 1.442695
    %v710 = vpow.pop %v709
    %v711 = vmul.f32 %v696, 1.442695
    %v712 = vpow.pop %v711
    %v713 = vmul.f32 %v697, 1.442695
    %v714 = vpow.pop %v713
    %v715 = vmul.f32 %v698, 1.442695
    %v716 = vpow.pop %v715
    %v717 = vmul.f32 %v699, 1.442695
    %v718 = vpow.pop %v717
    %v719 = vmul.f32 %v700, 1.442695
    %v720 = vpow.pop %v719
    %v721 = vmul.f32 %v701, 1.442695
    %v722 = vpow.pop %v721
    %v723 = vmul.f32 %v702, 1.442695
    %v724 = vpow.pop %v723
    %v725 = vmul.f32 %v703, 1.442695
    %v726 = vpow.pop %v725
    %v727 = vmul.f32 %v704, 1.442695
    %v728 = vpow.pop %v727
    %v729 = vadd.f32 %v706, 1.0
    %v730 = vadd.f32 %v708, 1.0
    %v731 = vadd.f32 %v710, 1.0
    %v732 = vadd.f32 %v712, 1.0
    %v733 = vadd.f32 %v714, 1.0
    %v734 = vadd.f32 %v716, 1.0
    %v735 = vadd.f32 %v718, 1.0
    %v736 = vadd.f32 %v720, 1.0
    %v737 = vadd.f32 %v722, 1.0
    %v738 = vadd.f32 %v724, 1.0
    %v739 = vadd.f32 %v726, 1.0
    %v740 = vadd.f32 %v728, 1.0
    %v741 = vrcp.pop %v729
    %v742 = vmul.f32 1.0, %v741
    %v743 = vrcp.pop %v730
    %v744 = vmul.f32 1.0, %v743
    %v745 = vrcp.pop %v731
    %v746 = vmul.f32 1.0, %v745
    %v747 = vrcp.pop %v732
    %v748 = vmul.f32 1.0, %v747
    %v749 = vrcp.pop %v733
    %v750 = vmul.f32 1.0, %v749
    %v751 = vrcp.pop %v734
    %v752 = vmul.f32 1.0, %v751
    %v753 = vrcp.pop %v735
    %v754 = vmul.f32 1.0, %v753
    %v755 = vrcp.pop %v736
    %v756 = vmul.f32 1.0, %v755
    %v757 = vrcp.pop %v737
    %v758 = vmul.f32 1.0, %v757
    %v759 = vrcp.pop %v738
    %v760 = vmul.f32 1.0, %v759
    %v761 = vrcp.pop %v739
    %v762 = vmul.f32 1.0, %v761
    %v763 = vrcp.pop %v740
    %v764 = vmul.f32 1.0, %v763
    %v765 = vtanh.pop %v680
    %v766 = vtanh.pop %v684
    %v767 = vtanh.pop %v688
    %v768 = vtanh.pop %v692
    %v773 = vrot.slane %v477, 7
    %v774 = vrot.slane %v478, 7
    %v775 = vrot.slane %v479, 7
    %v776 = vrot.slane %v480, 7
    %v781 = vmul.f32 %v744, %v773
    %v782 = vmul.f32 %v750, %v774
    %v783 = vmul.f32 %v756, %v775
    %v784 = vmul.f32 %v762, %v776
    %v785 = vmul.f32 %v742, %v765
    %v786 = vmul.f32 %v748, %v766
    %v787 = vmul.f32 %v754, %v767
    %v788 = vmul.f32 %v760, %v768
    %v789 = vadd.f32 %v781, %v785
    %v790 = vadd.f32 %v782, %v786
    %v791 = vadd.f32 %v783, %v787
    %v792 = vadd.f32 %v784, %v788
    %v793 = vtanh.pop %v789
    %v794 = vtanh.pop %v790
    %v795 = vtanh.pop %v791
    %v796 = vtanh.pop %v792
    %v797 = vmul.f32 %v746, %v793
    %v798 = vmul.f32 %v752, %v794
    %v799 = vmul.f32 %v758, %v795
    %v800 = vmul.f32 %v764, %v796
    %v805 = vrot.slane %v797, 1
    %v806 = vsel %vm494, %v798, %v805
    %v807 = vrot.slane %v799, 7
    %v808 = vsel %vm497, %v807, %v806
    %v809 = vrot.slane %v800, 6
    %v810 = vsel %vm500, %v809, %v808
    %812 = vmatprep.subr.mxu0 %v105
    %813 = vmatpush1.msra.mxu0 %v104
    %814 = vmatprep.subr.mxu0 %v101
    %815 = vmatpush1.msra.mxu0 %v100
    %816 = vmatprep.subr.mxu0 %v97
    %817 = vmatpush1.msra.mxu0 %v96
    %818 = vmatprep.subr.mxu0 %v93
    %819 = vmatpush1.msra.mxu0 %v92
    %820 = vmatprep.subr.mxu0 %v89
    %821 = vmatpush1.msra.mxu0 %v88
    %822 = vmatprep.subr.mxu0 %v85
    %823 = vmatpush1.msra.mxu0 %v84
    %824 = vmatprep.subr.mxu0 %v81
    %825 = vmatpush1.msra.mxu0 %v80
    %826 = vmatprep.subr.mxu0 %v77
    %827 = vmatpush1.msra.mxu0 %v76
    %828 = vmatprep.subr.mxu0 %v73
    %829 = vmatpush1.msra.mxu0 %v72
    %830 = vmatprep.subr.mxu0 %v69
    %831 = vmatpush1.msra.mxu0 %v68
    %832 = vmatprep.subr.mxu0 %v65
    %833 = vmatpush1.msra.mxu0 %v64
    %834 = vmatprep.subr.mxu0 %v61
    %835 = vmatpush1.msra.mxu0 %v60
    %836 = vmatprep.subr.mxu0 %v57
    %837 = vmatpush1.msra.mxu0 %v56
    %838 = vmatprep.subr.mxu0 %v53
    %839 = vmatpush1.msra.mxu0 %v52
    %840 = vmatprep.subr.mxu0 %v49
    %841 = vmatpush1.msra.mxu0 %v48
    %842 = vmatprep.subr.mxu0 %v45
    %843 = vmatpush1.msra.mxu0 %v44
    %844 = vmatprep.subr.mxu0 0.0
    %845 = vmatpush2.msra.mxu0 0.0
    %846 = vmatprep.subr.mxu0 0.0
    %847 = vmatpush2.msra.mxu0 0.0
    %848 = vmatprep.subr.mxu0 0.0
    %849 = vmatpush2.msra.mxu0 0.0
    %850 = vmatprep.subr.mxu0 0.0
    %851 = vmatpush2.msra.mxu0 0.0
    %852 = vmatprep.subr.mxu0 0.0
    %853 = vmatpush2.msra.mxu0 0.0
    %854 = vmatprep.subr.mxu0 0.0
    %855 = vmatpush2.msra.mxu0 0.0
    %856 = vmatprep.subr.mxu0 0.0
    %857 = vmatpush2.msra.mxu0 0.0
    %858 = vmatprep.subr.mxu0 0.0
    %859 = vmatpush2.msra.mxu0 0.0
    %860 = vmatprep.subr.mxu0 0.0
    %861 = vmatpush2.msra.mxu0 0.0
    %862 = vmatprep.subr.mxu0 0.0
    %863 = vmatpush2.msra.mxu0 0.0
    %864 = vmatprep.subr.mxu0 0.0
    %865 = vmatpush2.msra.mxu0 0.0
    %866 = vmatprep.subr.mxu0 0.0
    %867 = vmatpush2.msra.mxu0 0.0
    %868 = vmatprep.subr.mxu0 0.0
    %869 = vmatpush2.msra.mxu0 0.0
    %870 = vmatprep.subr.mxu0 0.0
    %871 = vmatpush2.msra.mxu0 0.0
    %872 = vmatprep.subr.mxu0 0.0
    %873 = vmatpush2.msra.mxu0 0.0
    %874 = vmatprep.subr.mxu0 0.0
    %875 = vmatpush2.msra.mxu0 0.0
    %876 = vmatprep.mubr.f32.mxu0 0.0
    %877 = vmatmul.mubr.f32.gmra.mxu0 %v810
    %v878 = vpop.f32.mrf.mxu0
    %v879 = vadd.f32 0.0, %v878
    %v880 = vpop.f32.mrf.mxu0
    %v881 = vadd.f32 0.0, %v880
    %882 = vdwg.mxu0
    %883 = vmatprep.subr.mxu0 %v107
    %884 = vmatpush1.msra.mxu0 %v106
    %885 = vmatprep.subr.mxu0 %v103
    %886 = vmatpush1.msra.mxu0 %v102
    %887 = vmatprep.subr.mxu0 %v99
    %888 = vmatpush1.msra.mxu0 %v98
    %889 = vmatprep.subr.mxu0 %v95
    %890 = vmatpush1.msra.mxu0 %v94
    %891 = vmatprep.subr.mxu0 %v91
    %892 = vmatpush1.msra.mxu0 %v90
    %893 = vmatprep.subr.mxu0 %v87
    %894 = vmatpush1.msra.mxu0 %v86
    %895 = vmatprep.subr.mxu0 %v83
    %896 = vmatpush1.msra.mxu0 %v82
    %897 = vmatprep.subr.mxu0 %v79
    %898 = vmatpush1.msra.mxu0 %v78
    %899 = vmatprep.subr.mxu0 %v75
    %900 = vmatpush1.msra.mxu0 %v74
    %901 = vmatprep.subr.mxu0 %v71
    %902 = vmatpush1.msra.mxu0 %v70
    %903 = vmatprep.subr.mxu0 %v67
    %904 = vmatpush1.msra.mxu0 %v66
    %905 = vmatprep.subr.mxu0 %v63
    %906 = vmatpush1.msra.mxu0 %v62
    %907 = vmatprep.subr.mxu0 %v59
    %908 = vmatpush1.msra.mxu0 %v58
    %909 = vmatprep.subr.mxu0 %v55
    %910 = vmatpush1.msra.mxu0 %v54
    %911 = vmatprep.subr.mxu0 %v51
    %912 = vmatpush1.msra.mxu0 %v50
    %913 = vmatprep.subr.mxu0 %v47
    %914 = vmatpush1.msra.mxu0 %v46
    %915 = vmatprep.subr.mxu0 0.0
    %916 = vmatpush2.msra.mxu0 0.0
    %917 = vmatprep.subr.mxu0 0.0
    %918 = vmatpush2.msra.mxu0 0.0
    %919 = vmatprep.subr.mxu0 0.0
    %920 = vmatpush2.msra.mxu0 0.0
    %921 = vmatprep.subr.mxu0 0.0
    %922 = vmatpush2.msra.mxu0 0.0
    %923 = vmatprep.subr.mxu0 0.0
    %924 = vmatpush2.msra.mxu0 0.0
    %925 = vmatprep.subr.mxu0 0.0
    %926 = vmatpush2.msra.mxu0 0.0
    %927 = vmatprep.subr.mxu0 0.0
    %928 = vmatpush2.msra.mxu0 0.0
    %929 = vmatprep.subr.mxu0 0.0
    %930 = vmatpush2.msra.mxu0 0.0
    %931 = vmatprep.subr.mxu0 0.0
    %932 = vmatpush2.msra.mxu0 0.0
    %933 = vmatprep.subr.mxu0 0.0
    %934 = vmatpush2.msra.mxu0 0.0
    %935 = vmatprep.subr.mxu0 0.0
    %936 = vmatpush2.msra.mxu0 0.0
    %937 = vmatprep.subr.mxu0 0.0
    %938 = vmatpush2.msra.mxu0 0.0
    %939 = vmatprep.subr.mxu0 0.0
    %940 = vmatpush2.msra.mxu0 0.0
    %941 = vmatprep.subr.mxu0 0.0
    %942 = vmatpush2.msra.mxu0 0.0
    %943 = vmatprep.subr.mxu0 0.0
    %944 = vmatpush2.msra.mxu0 0.0
    %945 = vmatprep.subr.mxu0 0.0
    %946 = vmatpush2.msra.mxu0 0.0
    %947 = vmatprep.mubr.f32.mxu0 0.0
    %948 = vmatmul.mubr.f32.gmra.mxu0 %v810
    %v949 = vpop.f32.mrf.mxu0
    %v950 = vadd.f32 0.0, %v949
    %v951 = vpop.f32.mrf.mxu0
    %v952 = vadd.f32 0.0, %v951
    %953 = vdwg.mxu0
    %v958 = vrot.slane %v879, 6
    %v959 = vrot.slane %v881, 6
    %v960 = vrot.slane %v950, 6
    %v961 = vrot.slane %v952, 6
    %v962 = vrot.slane %v879, 7
    %v963 = vrot.slane %v881, 7
    %v964 = vrot.slane %v950, 7
    %v965 = vrot.slane %v952, 7
    %v966 = vrot.slane %v879, 1
    %v967 = vrot.slane %v881, 1
    %v968 = vrot.slane %v950, 1
    %v969 = vrot.slane %v952, 1
    %v986 = vadd.f32 %v187, %v958
    %v987 = vadd.f32 %v188, %v959
    %v988 = vadd.f32 %v189, %v960
    %v989 = vadd.f32 %v190, %v961
    %v990 = vadd.f32 %v191, %v962
    %v991 = vadd.f32 %v192, %v963
    %v992 = vadd.f32 %v193, %v964
    %v993 = vadd.f32 %v194, %v965
    %v994 = vadd.f32 %v195, %v879
    %v995 = vadd.f32 %v196, %v881
    %v996 = vadd.f32 %v197, %v950
    %v997 = vadd.f32 %v198, %v952
    %v998 = vadd.f32 %v199, %v966
    %v999 = vadd.f32 %v200, %v967
    %v1000 = vadd.f32 %v201, %v968
    %v1001 = vadd.f32 %v202, %v969
    %v1002 = vxor.u32 %v986, 2147483648
    %v1003 = vxor.u32 %v987, 2147483648
    %v1004 = vxor.u32 %v988, 2147483648
    %v1005 = vxor.u32 %v990, 2147483648
    %v1006 = vxor.u32 %v991, 2147483648
    %v1007 = vxor.u32 %v992, 2147483648
    %v1008 = vxor.u32 %v994, 2147483648
    %v1009 = vxor.u32 %v995, 2147483648
    %v1010 = vxor.u32 %v996, 2147483648
    %v1011 = vxor.u32 %v998, 2147483648
    %v1012 = vxor.u32 %v999, 2147483648
    %v1013 = vxor.u32 %v1000, 2147483648
    %v1014 = vmul.f32 %v1002, 1.442695
    %v1015 = vpow.pop %v1014
    %v1016 = vmul.f32 %v1003, 1.442695
    %v1017 = vpow.pop %v1016
    %v1018 = vmul.f32 %v1004, 1.442695
    %v1019 = vpow.pop %v1018
    %v1020 = vmul.f32 %v1005, 1.442695
    %v1021 = vpow.pop %v1020
    %v1022 = vmul.f32 %v1006, 1.442695
    %v1023 = vpow.pop %v1022
    %v1024 = vmul.f32 %v1007, 1.442695
    %v1025 = vpow.pop %v1024
    %v1026 = vmul.f32 %v1008, 1.442695
    %v1027 = vpow.pop %v1026
    %v1028 = vmul.f32 %v1009, 1.442695
    %v1029 = vpow.pop %v1028
    %v1030 = vmul.f32 %v1010, 1.442695
    %v1031 = vpow.pop %v1030
    %v1032 = vmul.f32 %v1011, 1.442695
    %v1033 = vpow.pop %v1032
    %v1034 = vmul.f32 %v1012, 1.442695
    %v1035 = vpow.pop %v1034
    %v1036 = vmul.f32 %v1013, 1.442695
    %v1037 = vpow.pop %v1036
    %v1038 = vadd.f32 %v1015, 1.0
    %v1039 = vadd.f32 %v1017, 1.0
    %v1040 = vadd.f32 %v1019, 1.0
    %v1041 = vadd.f32 %v1021, 1.0
    %v1042 = vadd.f32 %v1023, 1.0
    %v1043 = vadd.f32 %v1025, 1.0
    %v1044 = vadd.f32 %v1027, 1.0
    %v1045 = vadd.f32 %v1029, 1.0
    %v1046 = vadd.f32 %v1031, 1.0
    %v1047 = vadd.f32 %v1033, 1.0
    %v1048 = vadd.f32 %v1035, 1.0
    %v1049 = vadd.f32 %v1037, 1.0
    %v1050 = vrcp.pop %v1038
    %v1051 = vmul.f32 1.0, %v1050
    %v1052 = vrcp.pop %v1039
    %v1053 = vmul.f32 1.0, %v1052
    %v1054 = vrcp.pop %v1040
    %v1055 = vmul.f32 1.0, %v1054
    %v1056 = vrcp.pop %v1041
    %v1057 = vmul.f32 1.0, %v1056
    %v1058 = vrcp.pop %v1042
    %v1059 = vmul.f32 1.0, %v1058
    %v1060 = vrcp.pop %v1043
    %v1061 = vmul.f32 1.0, %v1060
    %v1062 = vrcp.pop %v1044
    %v1063 = vmul.f32 1.0, %v1062
    %v1064 = vrcp.pop %v1045
    %v1065 = vmul.f32 1.0, %v1064
    %v1066 = vrcp.pop %v1046
    %v1067 = vmul.f32 1.0, %v1066
    %v1068 = vrcp.pop %v1047
    %v1069 = vmul.f32 1.0, %v1068
    %v1070 = vrcp.pop %v1048
    %v1071 = vmul.f32 1.0, %v1070
    %v1072 = vrcp.pop %v1049
    %v1073 = vmul.f32 1.0, %v1072
    %v1074 = vtanh.pop %v989
    %v1075 = vtanh.pop %v993
    %v1076 = vtanh.pop %v997
    %v1077 = vtanh.pop %v1001
    %v1082 = vrot.slane %v789, 7
    %v1083 = vrot.slane %v790, 7
    %v1084 = vrot.slane %v791, 7
    %v1085 = vrot.slane %v792, 7
    %v1090 = vmul.f32 %v1053, %v1082
    %v1091 = vmul.f32 %v1059, %v1083
    %v1092 = vmul.f32 %v1065, %v1084
    %v1093 = vmul.f32 %v1071, %v1085
    %v1094 = vmul.f32 %v1051, %v1074
    %v1095 = vmul.f32 %v1057, %v1075
    %v1096 = vmul.f32 %v1063, %v1076
    %v1097 = vmul.f32 %v1069, %v1077
    %v1098 = vadd.f32 %v1090, %v1094
    %v1099 = vadd.f32 %v1091, %v1095
    %v1100 = vadd.f32 %v1092, %v1096
    %v1101 = vadd.f32 %v1093, %v1097
    %v1102 = vtanh.pop %v1098
    %v1103 = vtanh.pop %v1099
    %v1104 = vtanh.pop %v1100
    %v1105 = vtanh.pop %v1101
    %v1106 = vmul.f32 %v1055, %v1102
    %v1107 = vmul.f32 %v1061, %v1103
    %v1108 = vmul.f32 %v1067, %v1104
    %v1109 = vmul.f32 %v1073, %v1105
    %v1114 = vrot.slane %v1106, 2
    %v1115 = vrot.slane %v1107, 1
    %v1116 = vsel %vm494, %v1115, %v1114
    %v1117 = vsel %vm497, %v1108, %v1116
    %v1118 = vrot.slane %v1109, 7
    %v1119 = vsel %vm500, %v1118, %v1117
    %1121 = vmatprep.subr.mxu0 %v105
    %1122 = vmatpush1.msra.mxu0 %v104
    %1123 = vmatprep.subr.mxu0 %v101
    %1124 = vmatpush1.msra.mxu0 %v100
    %1125 = vmatprep.subr.mxu0 %v97
    %1126 = vmatpush1.msra.mxu0 %v96
    %1127 = vmatprep.subr.mxu0 %v93
    %1128 = vmatpush1.msra.mxu0 %v92
    %1129 = vmatprep.subr.mxu0 %v89
    %1130 = vmatpush1.msra.mxu0 %v88
    %1131 = vmatprep.subr.mxu0 %v85
    %1132 = vmatpush1.msra.mxu0 %v84
    %1133 = vmatprep.subr.mxu0 %v81
    %1134 = vmatpush1.msra.mxu0 %v80
    %1135 = vmatprep.subr.mxu0 %v77
    %1136 = vmatpush1.msra.mxu0 %v76
    %1137 = vmatprep.subr.mxu0 %v73
    %1138 = vmatpush1.msra.mxu0 %v72
    %1139 = vmatprep.subr.mxu0 %v69
    %1140 = vmatpush1.msra.mxu0 %v68
    %1141 = vmatprep.subr.mxu0 %v65
    %1142 = vmatpush1.msra.mxu0 %v64
    %1143 = vmatprep.subr.mxu0 %v61
    %1144 = vmatpush1.msra.mxu0 %v60
    %1145 = vmatprep.subr.mxu0 %v57
    %1146 = vmatpush1.msra.mxu0 %v56
    %1147 = vmatprep.subr.mxu0 %v53
    %1148 = vmatpush1.msra.mxu0 %v52
    %1149 = vmatprep.subr.mxu0 %v49
    %1150 = vmatpush1.msra.mxu0 %v48
    %1151 = vmatprep.subr.mxu0 %v45
    %1152 = vmatpush1.msra.mxu0 %v44
    %1153 = vmatprep.subr.mxu0 0.0
    %1154 = vmatpush2.msra.mxu0 0.0
    %1155 = vmatprep.subr.mxu0 0.0
    %1156 = vmatpush2.msra.mxu0 0.0
    %1157 = vmatprep.subr.mxu0 0.0
    %1158 = vmatpush2.msra.mxu0 0.0
    %1159 = vmatprep.subr.mxu0 0.0
    %1160 = vmatpush2.msra.mxu0 0.0
    %1161 = vmatprep.subr.mxu0 0.0
    %1162 = vmatpush2.msra.mxu0 0.0
    %1163 = vmatprep.subr.mxu0 0.0
    %1164 = vmatpush2.msra.mxu0 0.0
    %1165 = vmatprep.subr.mxu0 0.0
    %1166 = vmatpush2.msra.mxu0 0.0
    %1167 = vmatprep.subr.mxu0 0.0
    %1168 = vmatpush2.msra.mxu0 0.0
    %1169 = vmatprep.subr.mxu0 0.0
    %1170 = vmatpush2.msra.mxu0 0.0
    %1171 = vmatprep.subr.mxu0 0.0
    %1172 = vmatpush2.msra.mxu0 0.0
    %1173 = vmatprep.subr.mxu0 0.0
    %1174 = vmatpush2.msra.mxu0 0.0
    %1175 = vmatprep.subr.mxu0 0.0
    %1176 = vmatpush2.msra.mxu0 0.0
    %1177 = vmatprep.subr.mxu0 0.0
    %1178 = vmatpush2.msra.mxu0 0.0
    %1179 = vmatprep.subr.mxu0 0.0
    %1180 = vmatpush2.msra.mxu0 0.0
    %1181 = vmatprep.subr.mxu0 0.0
    %1182 = vmatpush2.msra.mxu0 0.0
    %1183 = vmatprep.subr.mxu0 0.0
    %1184 = vmatpush2.msra.mxu0 0.0
    %1185 = vmatprep.mubr.f32.mxu0 0.0
    %1186 = vmatmul.mubr.f32.gmra.mxu0 %v1119
    %v1187 = vpop.f32.mrf.mxu0
    %v1188 = vadd.f32 0.0, %v1187
    %v1189 = vpop.f32.mrf.mxu0
    %v1190 = vadd.f32 0.0, %v1189
    %1191 = vdwg.mxu0
    %1192 = vmatprep.subr.mxu0 %v107
    %1193 = vmatpush1.msra.mxu0 %v106
    %1194 = vmatprep.subr.mxu0 %v103
    %1195 = vmatpush1.msra.mxu0 %v102
    %1196 = vmatprep.subr.mxu0 %v99
    %1197 = vmatpush1.msra.mxu0 %v98
    %1198 = vmatprep.subr.mxu0 %v95
    %1199 = vmatpush1.msra.mxu0 %v94
    %1200 = vmatprep.subr.mxu0 %v91
    %1201 = vmatpush1.msra.mxu0 %v90
    %1202 = vmatprep.subr.mxu0 %v87
    %1203 = vmatpush1.msra.mxu0 %v86
    %1204 = vmatprep.subr.mxu0 %v83
    %1205 = vmatpush1.msra.mxu0 %v82
    %1206 = vmatprep.subr.mxu0 %v79
    %1207 = vmatpush1.msra.mxu0 %v78
    %1208 = vmatprep.subr.mxu0 %v75
    %1209 = vmatpush1.msra.mxu0 %v74
    %1210 = vmatprep.subr.mxu0 %v71
    %1211 = vmatpush1.msra.mxu0 %v70
    %1212 = vmatprep.subr.mxu0 %v67
    %1213 = vmatpush1.msra.mxu0 %v66
    %1214 = vmatprep.subr.mxu0 %v63
    %1215 = vmatpush1.msra.mxu0 %v62
    %1216 = vmatprep.subr.mxu0 %v59
    %1217 = vmatpush1.msra.mxu0 %v58
    %1218 = vmatprep.subr.mxu0 %v55
    %1219 = vmatpush1.msra.mxu0 %v54
    %1220 = vmatprep.subr.mxu0 %v51
    %1221 = vmatpush1.msra.mxu0 %v50
    %1222 = vmatprep.subr.mxu0 %v47
    %1223 = vmatpush1.msra.mxu0 %v46
    %1224 = vmatprep.subr.mxu0 0.0
    %1225 = vmatpush2.msra.mxu0 0.0
    %1226 = vmatprep.subr.mxu0 0.0
    %1227 = vmatpush2.msra.mxu0 0.0
    %1228 = vmatprep.subr.mxu0 0.0
    %1229 = vmatpush2.msra.mxu0 0.0
    %1230 = vmatprep.subr.mxu0 0.0
    %1231 = vmatpush2.msra.mxu0 0.0
    %1232 = vmatprep.subr.mxu0 0.0
    %1233 = vmatpush2.msra.mxu0 0.0
    %1234 = vmatprep.subr.mxu0 0.0
    %1235 = vmatpush2.msra.mxu0 0.0
    %1236 = vmatprep.subr.mxu0 0.0
    %1237 = vmatpush2.msra.mxu0 0.0
    %1238 = vmatprep.subr.mxu0 0.0
    %1239 = vmatpush2.msra.mxu0 0.0
    %1240 = vmatprep.subr.mxu0 0.0
    %1241 = vmatpush2.msra.mxu0 0.0
    %1242 = vmatprep.subr.mxu0 0.0
    %1243 = vmatpush2.msra.mxu0 0.0
    %1244 = vmatprep.subr.mxu0 0.0
    %1245 = vmatpush2.msra.mxu0 0.0
    %1246 = vmatprep.subr.mxu0 0.0
    %1247 = vmatpush2.msra.mxu0 0.0
    %1248 = vmatprep.subr.mxu0 0.0
    %1249 = vmatpush2.msra.mxu0 0.0
    %1250 = vmatprep.subr.mxu0 0.0
    %1251 = vmatpush2.msra.mxu0 0.0
    %1252 = vmatprep.subr.mxu0 0.0
    %1253 = vmatpush2.msra.mxu0 0.0
    %1254 = vmatprep.subr.mxu0 0.0
    %1255 = vmatpush2.msra.mxu0 0.0
    %1256 = vmatprep.mubr.f32.mxu0 0.0
    %1257 = vmatmul.mubr.f32.gmra.mxu0 %v1119
    %v1258 = vpop.f32.mrf.mxu0
    %v1259 = vadd.f32 0.0, %v1258
    %v1260 = vpop.f32.mrf.mxu0
    %v1261 = vadd.f32 0.0, %v1260
    %1262 = vdwg.mxu0
    %v1267 = vrot.slane %v1188, 5
    %v1268 = vrot.slane %v1190, 5
    %v1269 = vrot.slane %v1259, 5
    %v1270 = vrot.slane %v1261, 5
    %v1271 = vrot.slane %v1188, 6
    %v1272 = vrot.slane %v1190, 6
    %v1273 = vrot.slane %v1259, 6
    %v1274 = vrot.slane %v1261, 6
    %v1275 = vrot.slane %v1188, 7
    %v1276 = vrot.slane %v1190, 7
    %v1277 = vrot.slane %v1259, 7
    %v1278 = vrot.slane %v1261, 7
    %v1295 = vadd.f32 %v187, %v1267
    %v1296 = vadd.f32 %v188, %v1268
    %v1297 = vadd.f32 %v189, %v1269
    %v1298 = vadd.f32 %v190, %v1270
    %v1299 = vadd.f32 %v191, %v1271
    %v1300 = vadd.f32 %v192, %v1272
    %v1301 = vadd.f32 %v193, %v1273
    %v1302 = vadd.f32 %v194, %v1274
    %v1303 = vadd.f32 %v195, %v1275
    %v1304 = vadd.f32 %v196, %v1276
    %v1305 = vadd.f32 %v197, %v1277
    %v1306 = vadd.f32 %v198, %v1278
    %v1307 = vadd.f32 %v199, %v1188
    %v1308 = vadd.f32 %v200, %v1190
    %v1309 = vadd.f32 %v201, %v1259
    %v1310 = vadd.f32 %v202, %v1261
    %v1311 = vxor.u32 %v1295, 2147483648
    %v1312 = vxor.u32 %v1296, 2147483648
    %v1313 = vxor.u32 %v1297, 2147483648
    %v1314 = vxor.u32 %v1299, 2147483648
    %v1315 = vxor.u32 %v1300, 2147483648
    %v1316 = vxor.u32 %v1301, 2147483648
    %v1317 = vxor.u32 %v1303, 2147483648
    %v1318 = vxor.u32 %v1304, 2147483648
    %v1319 = vxor.u32 %v1305, 2147483648
    %v1320 = vxor.u32 %v1307, 2147483648
    %v1321 = vxor.u32 %v1308, 2147483648
    %v1322 = vxor.u32 %v1309, 2147483648
    %v1323 = vmul.f32 %v1311, 1.442695
    %v1324 = vpow.pop %v1323
    %v1325 = vmul.f32 %v1312, 1.442695
    %v1326 = vpow.pop %v1325
    %v1327 = vmul.f32 %v1313, 1.442695
    %v1328 = vpow.pop %v1327
    %v1329 = vmul.f32 %v1314, 1.442695
    %v1330 = vpow.pop %v1329
    %v1331 = vmul.f32 %v1315, 1.442695
    %v1332 = vpow.pop %v1331
    %v1333 = vmul.f32 %v1316, 1.442695
    %v1334 = vpow.pop %v1333
    %v1335 = vmul.f32 %v1317, 1.442695
    %v1336 = vpow.pop %v1335
    %v1337 = vmul.f32 %v1318, 1.442695
    %v1338 = vpow.pop %v1337
    %v1339 = vmul.f32 %v1319, 1.442695
    %v1340 = vpow.pop %v1339
    %v1341 = vmul.f32 %v1320, 1.442695
    %v1342 = vpow.pop %v1341
    %v1343 = vmul.f32 %v1321, 1.442695
    %v1344 = vpow.pop %v1343
    %v1345 = vmul.f32 %v1322, 1.442695
    %v1346 = vpow.pop %v1345
    %v1347 = vadd.f32 %v1324, 1.0
    %v1348 = vadd.f32 %v1326, 1.0
    %v1349 = vadd.f32 %v1328, 1.0
    %v1350 = vadd.f32 %v1330, 1.0
    %v1351 = vadd.f32 %v1332, 1.0
    %v1352 = vadd.f32 %v1334, 1.0
    %v1353 = vadd.f32 %v1336, 1.0
    %v1354 = vadd.f32 %v1338, 1.0
    %v1355 = vadd.f32 %v1340, 1.0
    %v1356 = vadd.f32 %v1342, 1.0
    %v1357 = vadd.f32 %v1344, 1.0
    %v1358 = vadd.f32 %v1346, 1.0
    %v1359 = vrcp.pop %v1347
    %v1360 = vmul.f32 1.0, %v1359
    %v1361 = vrcp.pop %v1348
    %v1362 = vmul.f32 1.0, %v1361
    %v1363 = vrcp.pop %v1349
    %v1364 = vmul.f32 1.0, %v1363
    %v1365 = vrcp.pop %v1350
    %v1366 = vmul.f32 1.0, %v1365
    %v1367 = vrcp.pop %v1351
    %v1368 = vmul.f32 1.0, %v1367
    %v1369 = vrcp.pop %v1352
    %v1370 = vmul.f32 1.0, %v1369
    %v1371 = vrcp.pop %v1353
    %v1372 = vmul.f32 1.0, %v1371
    %v1373 = vrcp.pop %v1354
    %v1374 = vmul.f32 1.0, %v1373
    %v1375 = vrcp.pop %v1355
    %v1376 = vmul.f32 1.0, %v1375
    %v1377 = vrcp.pop %v1356
    %v1378 = vmul.f32 1.0, %v1377
    %v1379 = vrcp.pop %v1357
    %v1380 = vmul.f32 1.0, %v1379
    %v1381 = vrcp.pop %v1358
    %v1382 = vmul.f32 1.0, %v1381
    %v1383 = vtanh.pop %v1298
    %v1384 = vtanh.pop %v1302
    %v1385 = vtanh.pop %v1306
    %v1386 = vtanh.pop %v1310
    %v1391 = vrot.slane %v1098, 7
    %v1392 = vrot.slane %v1099, 7
    %v1393 = vrot.slane %v1100, 7
    %v1394 = vrot.slane %v1101, 7
    %v1399 = vmul.f32 %v1362, %v1391
    %v1400 = vmul.f32 %v1368, %v1392
    %v1401 = vmul.f32 %v1374, %v1393
    %v1402 = vmul.f32 %v1380, %v1394
    %v1403 = vmul.f32 %v1360, %v1383
    %v1404 = vmul.f32 %v1366, %v1384
    %v1405 = vmul.f32 %v1372, %v1385
    %v1406 = vmul.f32 %v1378, %v1386
    %v1407 = vadd.f32 %v1399, %v1403
    %v1408 = vadd.f32 %v1400, %v1404
    %v1409 = vadd.f32 %v1401, %v1405
    %v1410 = vadd.f32 %v1402, %v1406
    %v1411 = vtanh.pop %v1407
    %v1412 = vtanh.pop %v1408
    %v1413 = vtanh.pop %v1409
    %v1414 = vtanh.pop %v1410
    %v1415 = vmul.f32 %v1364, %v1411
    %v1416 = vmul.f32 %v1370, %v1412
    %v1417 = vmul.f32 %v1376, %v1413
    %v1418 = vmul.f32 %v1382, %v1414
    %v1423 = vrot.slane %v1415, 3
    %v1424 = vrot.slane %v1416, 2
    %v1425 = vsel %vm494, %v1424, %v1423
    %v1426 = vrot.slane %v1417, 1
    %v1427 = vsel %vm497, %v1426, %v1425
    %v1428 = vsel %vm500, %v1418, %v1427
    %1430 = vmatprep.subr.mxu0 %v105
    %1431 = vmatpush1.msra.mxu0 %v104
    %1432 = vmatprep.subr.mxu0 %v101
    %1433 = vmatpush1.msra.mxu0 %v100
    %1434 = vmatprep.subr.mxu0 %v97
    %1435 = vmatpush1.msra.mxu0 %v96
    %1436 = vmatprep.subr.mxu0 %v93
    %1437 = vmatpush1.msra.mxu0 %v92
    %1438 = vmatprep.subr.mxu0 %v89
    %1439 = vmatpush1.msra.mxu0 %v88
    %1440 = vmatprep.subr.mxu0 %v85
    %1441 = vmatpush1.msra.mxu0 %v84
    %1442 = vmatprep.subr.mxu0 %v81
    %1443 = vmatpush1.msra.mxu0 %v80
    %1444 = vmatprep.subr.mxu0 %v77
    %1445 = vmatpush1.msra.mxu0 %v76
    %1446 = vmatprep.subr.mxu0 %v73
    %1447 = vmatpush1.msra.mxu0 %v72
    %1448 = vmatprep.subr.mxu0 %v69
    %1449 = vmatpush1.msra.mxu0 %v68
    %1450 = vmatprep.subr.mxu0 %v65
    %1451 = vmatpush1.msra.mxu0 %v64
    %1452 = vmatprep.subr.mxu0 %v61
    %1453 = vmatpush1.msra.mxu0 %v60
    %1454 = vmatprep.subr.mxu0 %v57
    %1455 = vmatpush1.msra.mxu0 %v56
    %1456 = vmatprep.subr.mxu0 %v53
    %1457 = vmatpush1.msra.mxu0 %v52
    %1458 = vmatprep.subr.mxu0 %v49
    %1459 = vmatpush1.msra.mxu0 %v48
    %1460 = vmatprep.subr.mxu0 %v45
    %1461 = vmatpush1.msra.mxu0 %v44
    %1462 = vmatprep.subr.mxu0 0.0
    %1463 = vmatpush2.msra.mxu0 0.0
    %1464 = vmatprep.subr.mxu0 0.0
    %1465 = vmatpush2.msra.mxu0 0.0
    %1466 = vmatprep.subr.mxu0 0.0
    %1467 = vmatpush2.msra.mxu0 0.0
    %1468 = vmatprep.subr.mxu0 0.0
    %1469 = vmatpush2.msra.mxu0 0.0
    %1470 = vmatprep.subr.mxu0 0.0
    %1471 = vmatpush2.msra.mxu0 0.0
    %1472 = vmatprep.subr.mxu0 0.0
    %1473 = vmatpush2.msra.mxu0 0.0
    %1474 = vmatprep.subr.mxu0 0.0
    %1475 = vmatpush2.msra.mxu0 0.0
    %1476 = vmatprep.subr.mxu0 0.0
    %1477 = vmatpush2.msra.mxu0 0.0
    %1478 = vmatprep.subr.mxu0 0.0
    %1479 = vmatpush2.msra.mxu0 0.0
    %1480 = vmatprep.subr.mxu0 0.0
    %1481 = vmatpush2.msra.mxu0 0.0
    %1482 = vmatprep.subr.mxu0 0.0
    %1483 = vmatpush2.msra.mxu0 0.0
    %1484 = vmatprep.subr.mxu0 0.0
    %1485 = vmatpush2.msra.mxu0 0.0
    %1486 = vmatprep.subr.mxu0 0.0
    %1487 = vmatpush2.msra.mxu0 0.0
    %1488 = vmatprep.subr.mxu0 0.0
    %1489 = vmatpush2.msra.mxu0 0.0
    %1490 = vmatprep.subr.mxu0 0.0
    %1491 = vmatpush2.msra.mxu0 0.0
    %1492 = vmatprep.subr.mxu0 0.0
    %1493 = vmatpush2.msra.mxu0 0.0
    %1494 = vmatprep.mubr.f32.mxu0 0.0
    %1495 = vmatmul.mubr.f32.gmra.mxu0 %v1428
    %v1496 = vpop.f32.mrf.mxu0
    %v1497 = vadd.f32 0.0, %v1496
    %v1498 = vpop.f32.mrf.mxu0
    %v1499 = vadd.f32 0.0, %v1498
    %1500 = vdwg.mxu0
    %1501 = vmatprep.subr.mxu0 %v107
    %1502 = vmatpush1.msra.mxu0 %v106
    %1503 = vmatprep.subr.mxu0 %v103
    %1504 = vmatpush1.msra.mxu0 %v102
    %1505 = vmatprep.subr.mxu0 %v99
    %1506 = vmatpush1.msra.mxu0 %v98
    %1507 = vmatprep.subr.mxu0 %v95
    %1508 = vmatpush1.msra.mxu0 %v94
    %1509 = vmatprep.subr.mxu0 %v91
    %1510 = vmatpush1.msra.mxu0 %v90
    %1511 = vmatprep.subr.mxu0 %v87
    %1512 = vmatpush1.msra.mxu0 %v86
    %1513 = vmatprep.subr.mxu0 %v83
    %1514 = vmatpush1.msra.mxu0 %v82
    %1515 = vmatprep.subr.mxu0 %v79
    %1516 = vmatpush1.msra.mxu0 %v78
    %1517 = vmatprep.subr.mxu0 %v75
    %1518 = vmatpush1.msra.mxu0 %v74
    %1519 = vmatprep.subr.mxu0 %v71
    %1520 = vmatpush1.msra.mxu0 %v70
    %1521 = vmatprep.subr.mxu0 %v67
    %1522 = vmatpush1.msra.mxu0 %v66
    %1523 = vmatprep.subr.mxu0 %v63
    %1524 = vmatpush1.msra.mxu0 %v62
    %1525 = vmatprep.subr.mxu0 %v59
    %1526 = vmatpush1.msra.mxu0 %v58
    %1527 = vmatprep.subr.mxu0 %v55
    %1528 = vmatpush1.msra.mxu0 %v54
    %1529 = vmatprep.subr.mxu0 %v51
    %1530 = vmatpush1.msra.mxu0 %v50
    %1531 = vmatprep.subr.mxu0 %v47
    %1532 = vmatpush1.msra.mxu0 %v46
    %1533 = vmatprep.subr.mxu0 0.0
    %1534 = vmatpush2.msra.mxu0 0.0
    %1535 = vmatprep.subr.mxu0 0.0
    %1536 = vmatpush2.msra.mxu0 0.0
    %1537 = vmatprep.subr.mxu0 0.0
    %1538 = vmatpush2.msra.mxu0 0.0
    %1539 = vmatprep.subr.mxu0 0.0
    %1540 = vmatpush2.msra.mxu0 0.0
    %1541 = vmatprep.subr.mxu0 0.0
    %1542 = vmatpush2.msra.mxu0 0.0
    %1543 = vmatprep.subr.mxu0 0.0
    %1544 = vmatpush2.msra.mxu0 0.0
    %1545 = vmatprep.subr.mxu0 0.0
    %1546 = vmatpush2.msra.mxu0 0.0
    %1547 = vmatprep.subr.mxu0 0.0
    %1548 = vmatpush2.msra.mxu0 0.0
    %1549 = vmatprep.subr.mxu0 0.0
    %1550 = vmatpush2.msra.mxu0 0.0
    %1551 = vmatprep.subr.mxu0 0.0
    %1552 = vmatpush2.msra.mxu0 0.0
    %1553 = vmatprep.subr.mxu0 0.0
    %1554 = vmatpush2.msra.mxu0 0.0
    %1555 = vmatprep.subr.mxu0 0.0
    %1556 = vmatpush2.msra.mxu0 0.0
    %1557 = vmatprep.subr.mxu0 0.0
    %1558 = vmatpush2.msra.mxu0 0.0
    %1559 = vmatprep.subr.mxu0 0.0
    %1560 = vmatpush2.msra.mxu0 0.0
    %1561 = vmatprep.subr.mxu0 0.0
    %1562 = vmatpush2.msra.mxu0 0.0
    %1563 = vmatprep.subr.mxu0 0.0
    %1564 = vmatpush2.msra.mxu0 0.0
    %1565 = vmatprep.mubr.f32.mxu0 0.0
    %1566 = vmatmul.mubr.f32.gmra.mxu0 %v1428
    %v1567 = vpop.f32.mrf.mxu0
    %v1568 = vadd.f32 0.0, %v1567
    %v1569 = vpop.f32.mrf.mxu0
    %v1570 = vadd.f32 0.0, %v1569
    %1571 = vdwg.mxu0
    %v1576 = vrot.slane %v1497, 4
    %v1577 = vrot.slane %v1499, 4
    %v1578 = vrot.slane %v1568, 4
    %v1579 = vrot.slane %v1570, 4
    %v1580 = vrot.slane %v1497, 5
    %v1581 = vrot.slane %v1499, 5
    %v1582 = vrot.slane %v1568, 5
    %v1583 = vrot.slane %v1570, 5
    %v1584 = vrot.slane %v1497, 6
    %v1585 = vrot.slane %v1499, 6
    %v1586 = vrot.slane %v1568, 6
    %v1587 = vrot.slane %v1570, 6
    %v1588 = vrot.slane %v1497, 7
    %v1589 = vrot.slane %v1499, 7
    %v1590 = vrot.slane %v1568, 7
    %v1591 = vrot.slane %v1570, 7
    %v1608 = vadd.f32 %v187, %v1576
    %v1609 = vadd.f32 %v188, %v1577
    %v1610 = vadd.f32 %v189, %v1578
    %v1611 = vadd.f32 %v190, %v1579
    %v1612 = vadd.f32 %v191, %v1580
    %v1613 = vadd.f32 %v192, %v1581
    %v1614 = vadd.f32 %v193, %v1582
    %v1615 = vadd.f32 %v194, %v1583
    %v1616 = vadd.f32 %v195, %v1584
    %v1617 = vadd.f32 %v196, %v1585
    %v1618 = vadd.f32 %v197, %v1586
    %v1619 = vadd.f32 %v198, %v1587
    %v1620 = vadd.f32 %v199, %v1588
    %v1621 = vadd.f32 %v200, %v1589
    %v1622 = vadd.f32 %v201, %v1590
    %v1623 = vadd.f32 %v202, %v1591
    %v1624 = vxor.u32 %v1608, 2147483648
    %v1625 = vxor.u32 %v1609, 2147483648
    %v1626 = vxor.u32 %v1610, 2147483648
    %v1627 = vxor.u32 %v1612, 2147483648
    %v1628 = vxor.u32 %v1613, 2147483648
    %v1629 = vxor.u32 %v1614, 2147483648
    %v1630 = vxor.u32 %v1616, 2147483648
    %v1631 = vxor.u32 %v1617, 2147483648
    %v1632 = vxor.u32 %v1618, 2147483648
    %v1633 = vxor.u32 %v1620, 2147483648
    %v1634 = vxor.u32 %v1621, 2147483648
    %v1635 = vxor.u32 %v1622, 2147483648
    %v1636 = vmul.f32 %v1624, 1.442695
    %v1637 = vpow.pop %v1636
    %v1638 = vmul.f32 %v1625, 1.442695
    %v1639 = vpow.pop %v1638
    %v1640 = vmul.f32 %v1626, 1.442695
    %v1641 = vpow.pop %v1640
    %v1642 = vmul.f32 %v1627, 1.442695
    %v1643 = vpow.pop %v1642
    %v1644 = vmul.f32 %v1628, 1.442695
    %v1645 = vpow.pop %v1644
    %v1646 = vmul.f32 %v1629, 1.442695
    %v1647 = vpow.pop %v1646
    %v1648 = vmul.f32 %v1630, 1.442695
    %v1649 = vpow.pop %v1648
    %v1650 = vmul.f32 %v1631, 1.442695
    %v1651 = vpow.pop %v1650
    %v1652 = vmul.f32 %v1632, 1.442695
    %v1653 = vpow.pop %v1652
    %v1654 = vmul.f32 %v1633, 1.442695
    %v1655 = vpow.pop %v1654
    %v1656 = vmul.f32 %v1634, 1.442695
    %v1657 = vpow.pop %v1656
    %v1658 = vmul.f32 %v1635, 1.442695
    %v1659 = vpow.pop %v1658
    %v1660 = vadd.f32 %v1637, 1.0
    %v1661 = vadd.f32 %v1639, 1.0
    %v1662 = vadd.f32 %v1641, 1.0
    %v1663 = vadd.f32 %v1643, 1.0
    %v1664 = vadd.f32 %v1645, 1.0
    %v1665 = vadd.f32 %v1647, 1.0
    %v1666 = vadd.f32 %v1649, 1.0
    %v1667 = vadd.f32 %v1651, 1.0
    %v1668 = vadd.f32 %v1653, 1.0
    %v1669 = vadd.f32 %v1655, 1.0
    %v1670 = vadd.f32 %v1657, 1.0
    %v1671 = vadd.f32 %v1659, 1.0
    %v1672 = vrcp.pop %v1660
    %v1673 = vmul.f32 1.0, %v1672
    %v1674 = vrcp.pop %v1661
    %v1675 = vmul.f32 1.0, %v1674
    %v1676 = vrcp.pop %v1662
    %v1677 = vmul.f32 1.0, %v1676
    %v1678 = vrcp.pop %v1663
    %v1679 = vmul.f32 1.0, %v1678
    %v1680 = vrcp.pop %v1664
    %v1681 = vmul.f32 1.0, %v1680
    %v1682 = vrcp.pop %v1665
    %v1683 = vmul.f32 1.0, %v1682
    %v1684 = vrcp.pop %v1666
    %v1685 = vmul.f32 1.0, %v1684
    %v1686 = vrcp.pop %v1667
    %v1687 = vmul.f32 1.0, %v1686
    %v1688 = vrcp.pop %v1668
    %v1689 = vmul.f32 1.0, %v1688
    %v1690 = vrcp.pop %v1669
    %v1691 = vmul.f32 1.0, %v1690
    %v1692 = vrcp.pop %v1670
    %v1693 = vmul.f32 1.0, %v1692
    %v1694 = vrcp.pop %v1671
    %v1695 = vmul.f32 1.0, %v1694
    %v1696 = vtanh.pop %v1611
    %v1697 = vtanh.pop %v1615
    %v1698 = vtanh.pop %v1619
    %v1699 = vtanh.pop %v1623
    %v1704 = vrot.slane %v1407, 7
    %v1705 = vrot.slane %v1408, 7
    %v1706 = vrot.slane %v1409, 7
    %v1707 = vrot.slane %v1410, 7
    %v1712 = vmul.f32 %v1675, %v1704
    %v1713 = vmul.f32 %v1681, %v1705
    %v1714 = vmul.f32 %v1687, %v1706
    %v1715 = vmul.f32 %v1693, %v1707
    %v1716 = vmul.f32 %v1673, %v1696
    %v1717 = vmul.f32 %v1679, %v1697
    %v1718 = vmul.f32 %v1685, %v1698
    %v1719 = vmul.f32 %v1691, %v1699
    %v1720 = vadd.f32 %v1712, %v1716
    %v1721 = vadd.f32 %v1713, %v1717
    %v1722 = vadd.f32 %v1714, %v1718
    %v1723 = vadd.f32 %v1715, %v1719
    %v1724 = vtanh.pop %v1720
    %v1725 = vtanh.pop %v1721
    %v1726 = vtanh.pop %v1722
    %v1727 = vtanh.pop %v1723
    %v1728 = vmul.f32 %v1677, %v1724
    %v1729 = vmul.f32 %v1683, %v1725
    %v1730 = vmul.f32 %v1689, %v1726
    %v1731 = vmul.f32 %v1695, %v1727
    %v1736 = vrot.slane %v1728, 4
    %v1737 = vrot.slane %v1729, 3
    %v1738 = vsel %vm494, %v1737, %v1736
    %v1739 = vrot.slane %v1730, 2
    %v1740 = vsel %vm497, %v1739, %v1738
    %v1741 = vrot.slane %v1731, 1
    %v1742 = vsel %vm500, %v1741, %v1740
    %1744 = vmatprep.subr.mxu0 %v105
    %1745 = vmatpush1.msra.mxu0 %v104
    %1746 = vmatprep.subr.mxu0 %v101
    %1747 = vmatpush1.msra.mxu0 %v100
    %1748 = vmatprep.subr.mxu0 %v97
    %1749 = vmatpush1.msra.mxu0 %v96
    %1750 = vmatprep.subr.mxu0 %v93
    %1751 = vmatpush1.msra.mxu0 %v92
    %1752 = vmatprep.subr.mxu0 %v89
    %1753 = vmatpush1.msra.mxu0 %v88
    %1754 = vmatprep.subr.mxu0 %v85
    %1755 = vmatpush1.msra.mxu0 %v84
    %1756 = vmatprep.subr.mxu0 %v81
    %1757 = vmatpush1.msra.mxu0 %v80
    %1758 = vmatprep.subr.mxu0 %v77
    %1759 = vmatpush1.msra.mxu0 %v76
    %1760 = vmatprep.subr.mxu0 %v73
    %1761 = vmatpush1.msra.mxu0 %v72
    %1762 = vmatprep.subr.mxu0 %v69
    %1763 = vmatpush1.msra.mxu0 %v68
    %1764 = vmatprep.subr.mxu0 %v65
    %1765 = vmatpush1.msra.mxu0 %v64
    %1766 = vmatprep.subr.mxu0 %v61
    %1767 = vmatpush1.msra.mxu0 %v60
    %1768 = vmatprep.subr.mxu0 %v57
    %1769 = vmatpush1.msra.mxu0 %v56
    %1770 = vmatprep.subr.mxu0 %v53
    %1771 = vmatpush1.msra.mxu0 %v52
    %1772 = vmatprep.subr.mxu0 %v49
    %1773 = vmatpush1.msra.mxu0 %v48
    %1774 = vmatprep.subr.mxu0 %v45
    %1775 = vmatpush1.msra.mxu0 %v44
    %1776 = vmatprep.subr.mxu0 0.0
    %1777 = vmatpush2.msra.mxu0 0.0
    %1778 = vmatprep.subr.mxu0 0.0
    %1779 = vmatpush2.msra.mxu0 0.0
    %1780 = vmatprep.subr.mxu0 0.0
    %1781 = vmatpush2.msra.mxu0 0.0
    %1782 = vmatprep.subr.mxu0 0.0
    %1783 = vmatpush2.msra.mxu0 0.0
    %1784 = vmatprep.subr.mxu0 0.0
    %1785 = vmatpush2.msra.mxu0 0.0
    %1786 = vmatprep.subr.mxu0 0.0
    %1787 = vmatpush2.msra.mxu0 0.0
    %1788 = vmatprep.subr.mxu0 0.0
    %1789 = vmatpush2.msra.mxu0 0.0
    %1790 = vmatprep.subr.mxu0 0.0
    %1791 = vmatpush2.msra.mxu0 0.0
    %1792 = vmatprep.subr.mxu0 0.0
    %1793 = vmatpush2.msra.mxu0 0.0
    %1794 = vmatprep.subr.mxu0 0.0
    %1795 = vmatpush2.msra.mxu0 0.0
    %1796 = vmatprep.subr.mxu0 0.0
    %1797 = vmatpush2.msra.mxu0 0.0
    %1798 = vmatprep.subr.mxu0 0.0
    %1799 = vmatpush2.msra.mxu0 0.0
    %1800 = vmatprep.subr.mxu0 0.0
    %1801 = vmatpush2.msra.mxu0 0.0
    %1802 = vmatprep.subr.mxu0 0.0
    %1803 = vmatpush2.msra.mxu0 0.0
    %1804 = vmatprep.subr.mxu0 0.0
    %1805 = vmatpush2.msra.mxu0 0.0
    %1806 = vmatprep.subr.mxu0 0.0
    %1807 = vmatpush2.msra.mxu0 0.0
    %1808 = vmatprep.mubr.f32.mxu0 0.0
    %1809 = vmatmul.mubr.f32.gmra.mxu0 %v1742
    %v1810 = vpop.f32.mrf.mxu0
    %v1811 = vadd.f32 0.0, %v1810
    %v1812 = vpop.f32.mrf.mxu0
    %v1813 = vadd.f32 0.0, %v1812
    %1814 = vdwg.mxu0
    %1815 = vmatprep.subr.mxu0 %v107
    %1816 = vmatpush1.msra.mxu0 %v106
    %1817 = vmatprep.subr.mxu0 %v103
    %1818 = vmatpush1.msra.mxu0 %v102
    %1819 = vmatprep.subr.mxu0 %v99
    %1820 = vmatpush1.msra.mxu0 %v98
    %1821 = vmatprep.subr.mxu0 %v95
    %1822 = vmatpush1.msra.mxu0 %v94
    %1823 = vmatprep.subr.mxu0 %v91
    %1824 = vmatpush1.msra.mxu0 %v90
    %1825 = vmatprep.subr.mxu0 %v87
    %1826 = vmatpush1.msra.mxu0 %v86
    %1827 = vmatprep.subr.mxu0 %v83
    %1828 = vmatpush1.msra.mxu0 %v82
    %1829 = vmatprep.subr.mxu0 %v79
    %1830 = vmatpush1.msra.mxu0 %v78
    %1831 = vmatprep.subr.mxu0 %v75
    %1832 = vmatpush1.msra.mxu0 %v74
    %1833 = vmatprep.subr.mxu0 %v71
    %1834 = vmatpush1.msra.mxu0 %v70
    %1835 = vmatprep.subr.mxu0 %v67
    %1836 = vmatpush1.msra.mxu0 %v66
    %1837 = vmatprep.subr.mxu0 %v63
    %1838 = vmatpush1.msra.mxu0 %v62
    %1839 = vmatprep.subr.mxu0 %v59
    %1840 = vmatpush1.msra.mxu0 %v58
    %1841 = vmatprep.subr.mxu0 %v55
    %1842 = vmatpush1.msra.mxu0 %v54
    %1843 = vmatprep.subr.mxu0 %v51
    %1844 = vmatpush1.msra.mxu0 %v50
    %1845 = vmatprep.subr.mxu0 %v47
    %1846 = vmatpush1.msra.mxu0 %v46
    %1847 = vmatprep.subr.mxu0 0.0
    %1848 = vmatpush2.msra.mxu0 0.0
    %1849 = vmatprep.subr.mxu0 0.0
    %1850 = vmatpush2.msra.mxu0 0.0
    %1851 = vmatprep.subr.mxu0 0.0
    %1852 = vmatpush2.msra.mxu0 0.0
    %1853 = vmatprep.subr.mxu0 0.0
    %1854 = vmatpush2.msra.mxu0 0.0
    %1855 = vmatprep.subr.mxu0 0.0
    %1856 = vmatpush2.msra.mxu0 0.0
    %1857 = vmatprep.subr.mxu0 0.0
    %1858 = vmatpush2.msra.mxu0 0.0
    %1859 = vmatprep.subr.mxu0 0.0
    %1860 = vmatpush2.msra.mxu0 0.0
    %1861 = vmatprep.subr.mxu0 0.0
    %1862 = vmatpush2.msra.mxu0 0.0
    %1863 = vmatprep.subr.mxu0 0.0
    %1864 = vmatpush2.msra.mxu0 0.0
    %1865 = vmatprep.subr.mxu0 0.0
    %1866 = vmatpush2.msra.mxu0 0.0
    %1867 = vmatprep.subr.mxu0 0.0
    %1868 = vmatpush2.msra.mxu0 0.0
    %1869 = vmatprep.subr.mxu0 0.0
    %1870 = vmatpush2.msra.mxu0 0.0
    %1871 = vmatprep.subr.mxu0 0.0
    %1872 = vmatpush2.msra.mxu0 0.0
    %1873 = vmatprep.subr.mxu0 0.0
    %1874 = vmatpush2.msra.mxu0 0.0
    %1875 = vmatprep.subr.mxu0 0.0
    %1876 = vmatpush2.msra.mxu0 0.0
    %1877 = vmatprep.subr.mxu0 0.0
    %1878 = vmatpush2.msra.mxu0 0.0
    %1879 = vmatprep.mubr.f32.mxu0 0.0
    %1880 = vmatmul.mubr.f32.gmra.mxu0 %v1742
    %v1881 = vpop.f32.mrf.mxu0
    %v1882 = vadd.f32 0.0, %v1881
    %v1883 = vpop.f32.mrf.mxu0
    %v1884 = vadd.f32 0.0, %v1883
    %1885 = vdwg.mxu0
    %v1890 = vrot.slane %v1811, 3
    %v1891 = vrot.slane %v1813, 3
    %v1892 = vrot.slane %v1882, 3
    %v1893 = vrot.slane %v1884, 3
    %v1894 = vrot.slane %v1811, 4
    %v1895 = vrot.slane %v1813, 4
    %v1896 = vrot.slane %v1882, 4
    %v1897 = vrot.slane %v1884, 4
    %v1898 = vrot.slane %v1811, 5
    %v1899 = vrot.slane %v1813, 5
    %v1900 = vrot.slane %v1882, 5
    %v1901 = vrot.slane %v1884, 5
    %v1902 = vrot.slane %v1811, 6
    %v1903 = vrot.slane %v1813, 6
    %v1904 = vrot.slane %v1882, 6
    %v1905 = vrot.slane %v1884, 6
    %v1922 = vadd.f32 %v187, %v1890
    %v1923 = vadd.f32 %v188, %v1891
    %v1924 = vadd.f32 %v189, %v1892
    %v1925 = vadd.f32 %v190, %v1893
    %v1926 = vadd.f32 %v191, %v1894
    %v1927 = vadd.f32 %v192, %v1895
    %v1928 = vadd.f32 %v193, %v1896
    %v1929 = vadd.f32 %v194, %v1897
    %v1930 = vadd.f32 %v195, %v1898
    %v1931 = vadd.f32 %v196, %v1899
    %v1932 = vadd.f32 %v197, %v1900
    %v1933 = vadd.f32 %v198, %v1901
    %v1934 = vadd.f32 %v199, %v1902
    %v1935 = vadd.f32 %v200, %v1903
    %v1936 = vadd.f32 %v201, %v1904
    %v1937 = vadd.f32 %v202, %v1905
    %v1938 = vxor.u32 %v1922, 2147483648
    %v1939 = vxor.u32 %v1923, 2147483648
    %v1940 = vxor.u32 %v1924, 2147483648
    %v1941 = vxor.u32 %v1926, 2147483648
    %v1942 = vxor.u32 %v1927, 2147483648
    %v1943 = vxor.u32 %v1928, 2147483648
    %v1944 = vxor.u32 %v1930, 2147483648
    %v1945 = vxor.u32 %v1931, 2147483648
    %v1946 = vxor.u32 %v1932, 2147483648
    %v1947 = vxor.u32 %v1934, 2147483648
    %v1948 = vxor.u32 %v1935, 2147483648
    %v1949 = vxor.u32 %v1936, 2147483648
    %v1950 = vmul.f32 %v1938, 1.442695
    %v1951 = vpow.pop %v1950
    %v1952 = vmul.f32 %v1939, 1.442695
    %v1953 = vpow.pop %v1952
    %v1954 = vmul.f32 %v1940, 1.442695
    %v1955 = vpow.pop %v1954
    %v1956 = vmul.f32 %v1941, 1.442695
    %v1957 = vpow.pop %v1956
    %v1958 = vmul.f32 %v1942, 1.442695
    %v1959 = vpow.pop %v1958
    %v1960 = vmul.f32 %v1943, 1.442695
    %v1961 = vpow.pop %v1960
    %v1962 = vmul.f32 %v1944, 1.442695
    %v1963 = vpow.pop %v1962
    %v1964 = vmul.f32 %v1945, 1.442695
    %v1965 = vpow.pop %v1964
    %v1966 = vmul.f32 %v1946, 1.442695
    %v1967 = vpow.pop %v1966
    %v1968 = vmul.f32 %v1947, 1.442695
    %v1969 = vpow.pop %v1968
    %v1970 = vmul.f32 %v1948, 1.442695
    %v1971 = vpow.pop %v1970
    %v1972 = vmul.f32 %v1949, 1.442695
    %v1973 = vpow.pop %v1972
    %v1974 = vadd.f32 %v1951, 1.0
    %v1975 = vadd.f32 %v1953, 1.0
    %v1976 = vadd.f32 %v1955, 1.0
    %v1977 = vadd.f32 %v1957, 1.0
    %v1978 = vadd.f32 %v1959, 1.0
    %v1979 = vadd.f32 %v1961, 1.0
    %v1980 = vadd.f32 %v1963, 1.0
    %v1981 = vadd.f32 %v1965, 1.0
    %v1982 = vadd.f32 %v1967, 1.0
    %v1983 = vadd.f32 %v1969, 1.0
    %v1984 = vadd.f32 %v1971, 1.0
    %v1985 = vadd.f32 %v1973, 1.0
    %v1986 = vrcp.pop %v1974
    %v1987 = vmul.f32 1.0, %v1986
    %v1988 = vrcp.pop %v1975
    %v1989 = vmul.f32 1.0, %v1988
    %v1990 = vrcp.pop %v1976
    %v1991 = vmul.f32 1.0, %v1990
    %v1992 = vrcp.pop %v1977
    %v1993 = vmul.f32 1.0, %v1992
    %v1994 = vrcp.pop %v1978
    %v1995 = vmul.f32 1.0, %v1994
    %v1996 = vrcp.pop %v1979
    %v1997 = vmul.f32 1.0, %v1996
    %v1998 = vrcp.pop %v1980
    %v1999 = vmul.f32 1.0, %v1998
    %v2000 = vrcp.pop %v1981
    %v2001 = vmul.f32 1.0, %v2000
    %v2002 = vrcp.pop %v1982
    %v2003 = vmul.f32 1.0, %v2002
    %v2004 = vrcp.pop %v1983
    %v2005 = vmul.f32 1.0, %v2004
    %v2006 = vrcp.pop %v1984
    %v2007 = vmul.f32 1.0, %v2006
    %v2008 = vrcp.pop %v1985
    %v2009 = vmul.f32 1.0, %v2008
    %v2010 = vtanh.pop %v1925
    %v2011 = vtanh.pop %v1929
    %v2012 = vtanh.pop %v1933
    %v2013 = vtanh.pop %v1937
    %v2018 = vrot.slane %v1720, 7
    %v2019 = vrot.slane %v1721, 7
    %v2020 = vrot.slane %v1722, 7
    %v2021 = vrot.slane %v1723, 7
    %v2026 = vmul.f32 %v1989, %v2018
    %v2027 = vmul.f32 %v1995, %v2019
    %v2028 = vmul.f32 %v2001, %v2020
    %v2029 = vmul.f32 %v2007, %v2021
    %v2030 = vmul.f32 %v1987, %v2010
    %v2031 = vmul.f32 %v1993, %v2011
    %v2032 = vmul.f32 %v1999, %v2012
    %v2033 = vmul.f32 %v2005, %v2013
    %v2034 = vadd.f32 %v2026, %v2030
    %v2035 = vadd.f32 %v2027, %v2031
    %v2036 = vadd.f32 %v2028, %v2032
    %v2037 = vadd.f32 %v2029, %v2033
    %v2038 = vtanh.pop %v2034
    %v2039 = vtanh.pop %v2035
    %v2040 = vtanh.pop %v2036
    %v2041 = vtanh.pop %v2037
    %v2042 = vmul.f32 %v1991, %v2038
    %v2043 = vmul.f32 %v1997, %v2039
    %v2044 = vmul.f32 %v2003, %v2040
    %v2045 = vmul.f32 %v2009, %v2041
    %v2050 = vrot.slane %v2042, 5
    %v2051 = vrot.slane %v2043, 4
    %v2052 = vsel %vm494, %v2051, %v2050
    %v2053 = vrot.slane %v2044, 3
    %v2054 = vsel %vm497, %v2053, %v2052
    %v2055 = vrot.slane %v2045, 2
    %v2056 = vsel %vm500, %v2055, %v2054
    %2058 = vmatprep.subr.mxu0 %v105
    %2059 = vmatpush1.msra.mxu0 %v104
    %2060 = vmatprep.subr.mxu0 %v101
    %2061 = vmatpush1.msra.mxu0 %v100
    %2062 = vmatprep.subr.mxu0 %v97
    %2063 = vmatpush1.msra.mxu0 %v96
    %2064 = vmatprep.subr.mxu0 %v93
    %2065 = vmatpush1.msra.mxu0 %v92
    %2066 = vmatprep.subr.mxu0 %v89
    %2067 = vmatpush1.msra.mxu0 %v88
    %2068 = vmatprep.subr.mxu0 %v85
    %2069 = vmatpush1.msra.mxu0 %v84
    %2070 = vmatprep.subr.mxu0 %v81
    %2071 = vmatpush1.msra.mxu0 %v80
    %2072 = vmatprep.subr.mxu0 %v77
    %2073 = vmatpush1.msra.mxu0 %v76
    %2074 = vmatprep.subr.mxu0 %v73
    %2075 = vmatpush1.msra.mxu0 %v72
    %2076 = vmatprep.subr.mxu0 %v69
    %2077 = vmatpush1.msra.mxu0 %v68
    %2078 = vmatprep.subr.mxu0 %v65
    %2079 = vmatpush1.msra.mxu0 %v64
    %2080 = vmatprep.subr.mxu0 %v61
    %2081 = vmatpush1.msra.mxu0 %v60
    %2082 = vmatprep.subr.mxu0 %v57
    %2083 = vmatpush1.msra.mxu0 %v56
    %2084 = vmatprep.subr.mxu0 %v53
    %2085 = vmatpush1.msra.mxu0 %v52
    %2086 = vmatprep.subr.mxu0 %v49
    %2087 = vmatpush1.msra.mxu0 %v48
    %2088 = vmatprep.subr.mxu0 %v45
    %2089 = vmatpush1.msra.mxu0 %v44
    %2090 = vmatprep.subr.mxu0 0.0
    %2091 = vmatpush2.msra.mxu0 0.0
    %2092 = vmatprep.subr.mxu0 0.0
    %2093 = vmatpush2.msra.mxu0 0.0
    %2094 = vmatprep.subr.mxu0 0.0
    %2095 = vmatpush2.msra.mxu0 0.0
    %2096 = vmatprep.subr.mxu0 0.0
    %2097 = vmatpush2.msra.mxu0 0.0
    %2098 = vmatprep.subr.mxu0 0.0
    %2099 = vmatpush2.msra.mxu0 0.0
    %2100 = vmatprep.subr.mxu0 0.0
    %2101 = vmatpush2.msra.mxu0 0.0
    %2102 = vmatprep.subr.mxu0 0.0
    %2103 = vmatpush2.msra.mxu0 0.0
    %2104 = vmatprep.subr.mxu0 0.0
    %2105 = vmatpush2.msra.mxu0 0.0
    %2106 = vmatprep.subr.mxu0 0.0
    %2107 = vmatpush2.msra.mxu0 0.0
    %2108 = vmatprep.subr.mxu0 0.0
    %2109 = vmatpush2.msra.mxu0 0.0
    %2110 = vmatprep.subr.mxu0 0.0
    %2111 = vmatpush2.msra.mxu0 0.0
    %2112 = vmatprep.subr.mxu0 0.0
    %2113 = vmatpush2.msra.mxu0 0.0
    %2114 = vmatprep.subr.mxu0 0.0
    %2115 = vmatpush2.msra.mxu0 0.0
    %2116 = vmatprep.subr.mxu0 0.0
    %2117 = vmatpush2.msra.mxu0 0.0
    %2118 = vmatprep.subr.mxu0 0.0
    %2119 = vmatpush2.msra.mxu0 0.0
    %2120 = vmatprep.subr.mxu0 0.0
    %2121 = vmatpush2.msra.mxu0 0.0
    %2122 = vmatprep.mubr.f32.mxu0 0.0
    %2123 = vmatmul.mubr.f32.gmra.mxu0 %v2056
    %v2124 = vpop.f32.mrf.mxu0
    %v2125 = vadd.f32 0.0, %v2124
    %v2126 = vpop.f32.mrf.mxu0
    %v2127 = vadd.f32 0.0, %v2126
    %2128 = vdwg.mxu0
    %2129 = vmatprep.subr.mxu0 %v107
    %2130 = vmatpush1.msra.mxu0 %v106
    %2131 = vmatprep.subr.mxu0 %v103
    %2132 = vmatpush1.msra.mxu0 %v102
    %2133 = vmatprep.subr.mxu0 %v99
    %2134 = vmatpush1.msra.mxu0 %v98
    %2135 = vmatprep.subr.mxu0 %v95
    %2136 = vmatpush1.msra.mxu0 %v94
    %2137 = vmatprep.subr.mxu0 %v91
    %2138 = vmatpush1.msra.mxu0 %v90
    %2139 = vmatprep.subr.mxu0 %v87
    %2140 = vmatpush1.msra.mxu0 %v86
    %2141 = vmatprep.subr.mxu0 %v83
    %2142 = vmatpush1.msra.mxu0 %v82
    %2143 = vmatprep.subr.mxu0 %v79
    %2144 = vmatpush1.msra.mxu0 %v78
    %2145 = vmatprep.subr.mxu0 %v75
    %2146 = vmatpush1.msra.mxu0 %v74
    %2147 = vmatprep.subr.mxu0 %v71
    %2148 = vmatpush1.msra.mxu0 %v70
    %2149 = vmatprep.subr.mxu0 %v67
    %2150 = vmatpush1.msra.mxu0 %v66
    %2151 = vmatprep.subr.mxu0 %v63
    %2152 = vmatpush1.msra.mxu0 %v62
    %2153 = vmatprep.subr.mxu0 %v59
    %2154 = vmatpush1.msra.mxu0 %v58
    %2155 = vmatprep.subr.mxu0 %v55
    %2156 = vmatpush1.msra.mxu0 %v54
    %2157 = vmatprep.subr.mxu0 %v51
    %2158 = vmatpush1.msra.mxu0 %v50
    %2159 = vmatprep.subr.mxu0 %v47
    %2160 = vmatpush1.msra.mxu0 %v46
    %2161 = vmatprep.subr.mxu0 0.0
    %2162 = vmatpush2.msra.mxu0 0.0
    %2163 = vmatprep.subr.mxu0 0.0
    %2164 = vmatpush2.msra.mxu0 0.0
    %2165 = vmatprep.subr.mxu0 0.0
    %2166 = vmatpush2.msra.mxu0 0.0
    %2167 = vmatprep.subr.mxu0 0.0
    %2168 = vmatpush2.msra.mxu0 0.0
    %2169 = vmatprep.subr.mxu0 0.0
    %2170 = vmatpush2.msra.mxu0 0.0
    %2171 = vmatprep.subr.mxu0 0.0
    %2172 = vmatpush2.msra.mxu0 0.0
    %2173 = vmatprep.subr.mxu0 0.0
    %2174 = vmatpush2.msra.mxu0 0.0
    %2175 = vmatprep.subr.mxu0 0.0
    %2176 = vmatpush2.msra.mxu0 0.0
    %2177 = vmatprep.subr.mxu0 0.0
    %2178 = vmatpush2.msra.mxu0 0.0
    %2179 = vmatprep.subr.mxu0 0.0
    %2180 = vmatpush2.msra.mxu0 0.0
    %2181 = vmatprep.subr.mxu0 0.0
    %2182 = vmatpush2.msra.mxu0 0.0
    %2183 = vmatprep.subr.mxu0 0.0
    %2184 = vmatpush2.msra.mxu0 0.0
    %2185 = vmatprep.subr.mxu0 0.0
    %2186 = vmatpush2.msra.mxu0 0.0
    %2187 = vmatprep.subr.mxu0 0.0
    %2188 = vmatpush2.msra.mxu0 0.0
    %2189 = vmatprep.subr.mxu0 0.0
    %2190 = vmatpush2.msra.mxu0 0.0
    %2191 = vmatprep.subr.mxu0 0.0
    %2192 = vmatpush2.msra.mxu0 0.0
    %2193 = vmatprep.mubr.f32.mxu0 0.0
    %2194 = vmatmul.mubr.f32.gmra.mxu0 %v2056
    %v2195 = vpop.f32.mrf.mxu0
    %v2196 = vadd.f32 0.0, %v2195
    %v2197 = vpop.f32.mrf.mxu0
    %v2198 = vadd.f32 0.0, %v2197
    %2199 = vdwg.mxu0
    %v2204 = vrot.slane %v2125, 2
    %v2205 = vrot.slane %v2127, 2
    %v2206 = vrot.slane %v2196, 2
    %v2207 = vrot.slane %v2198, 2
    %v2208 = vrot.slane %v2125, 3
    %v2209 = vrot.slane %v2127, 3
    %v2210 = vrot.slane %v2196, 3
    %v2211 = vrot.slane %v2198, 3
    %v2212 = vrot.slane %v2125, 4
    %v2213 = vrot.slane %v2127, 4
    %v2214 = vrot.slane %v2196, 4
    %v2215 = vrot.slane %v2198, 4
    %v2216 = vrot.slane %v2125, 5
    %v2217 = vrot.slane %v2127, 5
    %v2218 = vrot.slane %v2196, 5
    %v2219 = vrot.slane %v2198, 5
    %v2236 = vadd.f32 %v187, %v2204
    %v2237 = vadd.f32 %v188, %v2205
    %v2238 = vadd.f32 %v189, %v2206
    %v2239 = vadd.f32 %v190, %v2207
    %v2240 = vadd.f32 %v191, %v2208
    %v2241 = vadd.f32 %v192, %v2209
    %v2242 = vadd.f32 %v193, %v2210
    %v2243 = vadd.f32 %v194, %v2211
    %v2244 = vadd.f32 %v195, %v2212
    %v2245 = vadd.f32 %v196, %v2213
    %v2246 = vadd.f32 %v197, %v2214
    %v2247 = vadd.f32 %v198, %v2215
    %v2248 = vadd.f32 %v199, %v2216
    %v2249 = vadd.f32 %v200, %v2217
    %v2250 = vadd.f32 %v201, %v2218
    %v2251 = vadd.f32 %v202, %v2219
    %v2252 = vxor.u32 %v2236, 2147483648
    %v2253 = vxor.u32 %v2237, 2147483648
    %v2254 = vxor.u32 %v2238, 2147483648
    %v2255 = vxor.u32 %v2240, 2147483648
    %v2256 = vxor.u32 %v2241, 2147483648
    %v2257 = vxor.u32 %v2242, 2147483648
    %v2258 = vxor.u32 %v2244, 2147483648
    %v2259 = vxor.u32 %v2245, 2147483648
    %v2260 = vxor.u32 %v2246, 2147483648
    %v2261 = vxor.u32 %v2248, 2147483648
    %v2262 = vxor.u32 %v2249, 2147483648
    %v2263 = vxor.u32 %v2250, 2147483648
    %v2264 = vmul.f32 %v2252, 1.442695
    %v2265 = vpow.pop %v2264
    %v2266 = vmul.f32 %v2253, 1.442695
    %v2267 = vpow.pop %v2266
    %v2268 = vmul.f32 %v2254, 1.442695
    %v2269 = vpow.pop %v2268
    %v2270 = vmul.f32 %v2255, 1.442695
    %v2271 = vpow.pop %v2270
    %v2272 = vmul.f32 %v2256, 1.442695
    %v2273 = vpow.pop %v2272
    %v2274 = vmul.f32 %v2257, 1.442695
    %v2275 = vpow.pop %v2274
    %v2276 = vmul.f32 %v2258, 1.442695
    %v2277 = vpow.pop %v2276
    %v2278 = vmul.f32 %v2259, 1.442695
    %v2279 = vpow.pop %v2278
    %v2280 = vmul.f32 %v2260, 1.442695
    %v2281 = vpow.pop %v2280
    %v2282 = vmul.f32 %v2261, 1.442695
    %v2283 = vpow.pop %v2282
    %v2284 = vmul.f32 %v2262, 1.442695
    %v2285 = vpow.pop %v2284
    %v2286 = vmul.f32 %v2263, 1.442695
    %v2287 = vpow.pop %v2286
    %v2288 = vadd.f32 %v2265, 1.0
    %v2289 = vadd.f32 %v2267, 1.0
    %v2290 = vadd.f32 %v2269, 1.0
    %v2291 = vadd.f32 %v2271, 1.0
    %v2292 = vadd.f32 %v2273, 1.0
    %v2293 = vadd.f32 %v2275, 1.0
    %v2294 = vadd.f32 %v2277, 1.0
    %v2295 = vadd.f32 %v2279, 1.0
    %v2296 = vadd.f32 %v2281, 1.0
    %v2297 = vadd.f32 %v2283, 1.0
    %v2298 = vadd.f32 %v2285, 1.0
    %v2299 = vadd.f32 %v2287, 1.0
    %v2300 = vrcp.pop %v2288
    %v2301 = vmul.f32 1.0, %v2300
    %v2302 = vrcp.pop %v2289
    %v2303 = vmul.f32 1.0, %v2302
    %v2304 = vrcp.pop %v2290
    %v2305 = vmul.f32 1.0, %v2304
    %v2306 = vrcp.pop %v2291
    %v2307 = vmul.f32 1.0, %v2306
    %v2308 = vrcp.pop %v2292
    %v2309 = vmul.f32 1.0, %v2308
    %v2310 = vrcp.pop %v2293
    %v2311 = vmul.f32 1.0, %v2310
    %v2312 = vrcp.pop %v2294
    %v2313 = vmul.f32 1.0, %v2312
    %v2314 = vrcp.pop %v2295
    %v2315 = vmul.f32 1.0, %v2314
    %v2316 = vrcp.pop %v2296
    %v2317 = vmul.f32 1.0, %v2316
    %v2318 = vrcp.pop %v2297
    %v2319 = vmul.f32 1.0, %v2318
    %v2320 = vrcp.pop %v2298
    %v2321 = vmul.f32 1.0, %v2320
    %v2322 = vrcp.pop %v2299
    %v2323 = vmul.f32 1.0, %v2322
    %v2324 = vtanh.pop %v2239
    %v2325 = vtanh.pop %v2243
    %v2326 = vtanh.pop %v2247
    %v2327 = vtanh.pop %v2251
    %v2332 = vrot.slane %v2034, 7
    %v2333 = vrot.slane %v2035, 7
    %v2334 = vrot.slane %v2036, 7
    %v2335 = vrot.slane %v2037, 7
    %v2340 = vmul.f32 %v2303, %v2332
    %v2341 = vmul.f32 %v2309, %v2333
    %v2342 = vmul.f32 %v2315, %v2334
    %v2343 = vmul.f32 %v2321, %v2335
    %v2344 = vmul.f32 %v2301, %v2324
    %v2345 = vmul.f32 %v2307, %v2325
    %v2346 = vmul.f32 %v2313, %v2326
    %v2347 = vmul.f32 %v2319, %v2327
    %v2348 = vadd.f32 %v2340, %v2344
    %v2349 = vadd.f32 %v2341, %v2345
    %v2350 = vadd.f32 %v2342, %v2346
    %v2351 = vadd.f32 %v2343, %v2347
    %v2352 = vtanh.pop %v2348
    %v2353 = vtanh.pop %v2349
    %v2354 = vtanh.pop %v2350
    %v2355 = vtanh.pop %v2351
    %v2356 = vmul.f32 %v2305, %v2352
    %v2357 = vmul.f32 %v2311, %v2353
    %v2358 = vmul.f32 %v2317, %v2354
    %v2359 = vmul.f32 %v2323, %v2355
    %v2364 = vrot.slane %v2356, 6
    %v2365 = vrot.slane %v2357, 5
    %v2366 = vsel %vm494, %v2365, %v2364
    %v2367 = vrot.slane %v2358, 4
    %v2368 = vsel %vm497, %v2367, %v2366
    %v2369 = vrot.slane %v2359, 3
    %v2370 = vsel %vm500, %v2369, %v2368
    %2372 = vmatprep.subr.mxu0 %v105
    %2373 = vmatpush1.msra.mxu0 %v104
    %2374 = vmatprep.subr.mxu0 %v101
    %2375 = vmatpush1.msra.mxu0 %v100
    %2376 = vmatprep.subr.mxu0 %v97
    %2377 = vmatpush1.msra.mxu0 %v96
    %2378 = vmatprep.subr.mxu0 %v93
    %2379 = vmatpush1.msra.mxu0 %v92
    %2380 = vmatprep.subr.mxu0 %v89
    %2381 = vmatpush1.msra.mxu0 %v88
    %2382 = vmatprep.subr.mxu0 %v85
    %2383 = vmatpush1.msra.mxu0 %v84
    %2384 = vmatprep.subr.mxu0 %v81
    %2385 = vmatpush1.msra.mxu0 %v80
    %2386 = vmatprep.subr.mxu0 %v77
    %2387 = vmatpush1.msra.mxu0 %v76
    %2388 = vmatprep.subr.mxu0 %v73
    %2389 = vmatpush1.msra.mxu0 %v72
    %2390 = vmatprep.subr.mxu0 %v69
    %2391 = vmatpush1.msra.mxu0 %v68
    %2392 = vmatprep.subr.mxu0 %v65
    %2393 = vmatpush1.msra.mxu0 %v64
    %2394 = vmatprep.subr.mxu0 %v61
    %2395 = vmatpush1.msra.mxu0 %v60
    %2396 = vmatprep.subr.mxu0 %v57
    %2397 = vmatpush1.msra.mxu0 %v56
    %2398 = vmatprep.subr.mxu0 %v53
    %2399 = vmatpush1.msra.mxu0 %v52
    %2400 = vmatprep.subr.mxu0 %v49
    %2401 = vmatpush1.msra.mxu0 %v48
    %2402 = vmatprep.subr.mxu0 %v45
    %2403 = vmatpush1.msra.mxu0 %v44
    %2404 = vmatprep.subr.mxu0 0.0
    %2405 = vmatpush2.msra.mxu0 0.0
    %2406 = vmatprep.subr.mxu0 0.0
    %2407 = vmatpush2.msra.mxu0 0.0
    %2408 = vmatprep.subr.mxu0 0.0
    %2409 = vmatpush2.msra.mxu0 0.0
    %2410 = vmatprep.subr.mxu0 0.0
    %2411 = vmatpush2.msra.mxu0 0.0
    %2412 = vmatprep.subr.mxu0 0.0
    %2413 = vmatpush2.msra.mxu0 0.0
    %2414 = vmatprep.subr.mxu0 0.0
    %2415 = vmatpush2.msra.mxu0 0.0
    %2416 = vmatprep.subr.mxu0 0.0
    %2417 = vmatpush2.msra.mxu0 0.0
    %2418 = vmatprep.subr.mxu0 0.0
    %2419 = vmatpush2.msra.mxu0 0.0
    %2420 = vmatprep.subr.mxu0 0.0
    %2421 = vmatpush2.msra.mxu0 0.0
    %2422 = vmatprep.subr.mxu0 0.0
    %2423 = vmatpush2.msra.mxu0 0.0
    %2424 = vmatprep.subr.mxu0 0.0
    %2425 = vmatpush2.msra.mxu0 0.0
    %2426 = vmatprep.subr.mxu0 0.0
    %2427 = vmatpush2.msra.mxu0 0.0
    %2428 = vmatprep.subr.mxu0 0.0
    %2429 = vmatpush2.msra.mxu0 0.0
    %2430 = vmatprep.subr.mxu0 0.0
    %2431 = vmatpush2.msra.mxu0 0.0
    %2432 = vmatprep.subr.mxu0 0.0
    %2433 = vmatpush2.msra.mxu0 0.0
    %2434 = vmatprep.subr.mxu0 0.0
    %2435 = vmatpush2.msra.mxu0 0.0
    %2436 = vmatprep.mubr.f32.mxu0 0.0
    %2437 = vmatmul.mubr.f32.gmra.mxu0 %v2370
    %v2438 = vpop.f32.mrf.mxu0
    %v2439 = vadd.f32 0.0, %v2438
    %v2440 = vpop.f32.mrf.mxu0
    %v2441 = vadd.f32 0.0, %v2440
    %2442 = vdwg.mxu0
    %2443 = vmatprep.subr.mxu0 %v107
    %2444 = vmatpush1.msra.mxu0 %v106
    %2445 = vmatprep.subr.mxu0 %v103
    %2446 = vmatpush1.msra.mxu0 %v102
    %2447 = vmatprep.subr.mxu0 %v99
    %2448 = vmatpush1.msra.mxu0 %v98
    %2449 = vmatprep.subr.mxu0 %v95
    %2450 = vmatpush1.msra.mxu0 %v94
    %2451 = vmatprep.subr.mxu0 %v91
    %2452 = vmatpush1.msra.mxu0 %v90
    %2453 = vmatprep.subr.mxu0 %v87
    %2454 = vmatpush1.msra.mxu0 %v86
    %2455 = vmatprep.subr.mxu0 %v83
    %2456 = vmatpush1.msra.mxu0 %v82
    %2457 = vmatprep.subr.mxu0 %v79
    %2458 = vmatpush1.msra.mxu0 %v78
    %2459 = vmatprep.subr.mxu0 %v75
    %2460 = vmatpush1.msra.mxu0 %v74
    %2461 = vmatprep.subr.mxu0 %v71
    %2462 = vmatpush1.msra.mxu0 %v70
    %2463 = vmatprep.subr.mxu0 %v67
    %2464 = vmatpush1.msra.mxu0 %v66
    %2465 = vmatprep.subr.mxu0 %v63
    %2466 = vmatpush1.msra.mxu0 %v62
    %2467 = vmatprep.subr.mxu0 %v59
    %2468 = vmatpush1.msra.mxu0 %v58
    %2469 = vmatprep.subr.mxu0 %v55
    %2470 = vmatpush1.msra.mxu0 %v54
    %2471 = vmatprep.subr.mxu0 %v51
    %2472 = vmatpush1.msra.mxu0 %v50
    %2473 = vmatprep.subr.mxu0 %v47
    %2474 = vmatpush1.msra.mxu0 %v46
    %2475 = vmatprep.subr.mxu0 0.0
    %2476 = vmatpush2.msra.mxu0 0.0
    %2477 = vmatprep.subr.mxu0 0.0
    %2478 = vmatpush2.msra.mxu0 0.0
    %2479 = vmatprep.subr.mxu0 0.0
    %2480 = vmatpush2.msra.mxu0 0.0
    %2481 = vmatprep.subr.mxu0 0.0
    %2482 = vmatpush2.msra.mxu0 0.0
    %2483 = vmatprep.subr.mxu0 0.0
    %2484 = vmatpush2.msra.mxu0 0.0
    %2485 = vmatprep.subr.mxu0 0.0
    %2486 = vmatpush2.msra.mxu0 0.0
    %2487 = vmatprep.subr.mxu0 0.0
    %2488 = vmatpush2.msra.mxu0 0.0
    %2489 = vmatprep.subr.mxu0 0.0
    %2490 = vmatpush2.msra.mxu0 0.0
    %2491 = vmatprep.subr.mxu0 0.0
    %2492 = vmatpush2.msra.mxu0 0.0
    %2493 = vmatprep.subr.mxu0 0.0
    %2494 = vmatpush2.msra.mxu0 0.0
    %2495 = vmatprep.subr.mxu0 0.0
    %2496 = vmatpush2.msra.mxu0 0.0
    %2497 = vmatprep.subr.mxu0 0.0
    %2498 = vmatpush2.msra.mxu0 0.0
    %2499 = vmatprep.subr.mxu0 0.0
    %2500 = vmatpush2.msra.mxu0 0.0
    %2501 = vmatprep.subr.mxu0 0.0
    %2502 = vmatpush2.msra.mxu0 0.0
    %2503 = vmatprep.subr.mxu0 0.0
    %2504 = vmatpush2.msra.mxu0 0.0
    %2505 = vmatprep.subr.mxu0 0.0
    %2506 = vmatpush2.msra.mxu0 0.0
    %2507 = vmatprep.mubr.f32.mxu0 0.0
    %2508 = vmatmul.mubr.f32.gmra.mxu0 %v2370
    %v2509 = vpop.f32.mrf.mxu0
    %v2510 = vadd.f32 0.0, %v2509
    %v2511 = vpop.f32.mrf.mxu0
    %v2512 = vadd.f32 0.0, %v2511
    %2513 = vdwg.mxu0
    %v2518 = vrot.slane %v2439, 1
    %v2519 = vrot.slane %v2441, 1
    %v2520 = vrot.slane %v2510, 1
    %v2521 = vrot.slane %v2512, 1
    %v2522 = vrot.slane %v2439, 2
    %v2523 = vrot.slane %v2441, 2
    %v2524 = vrot.slane %v2510, 2
    %v2525 = vrot.slane %v2512, 2
    %v2526 = vrot.slane %v2439, 3
    %v2527 = vrot.slane %v2441, 3
    %v2528 = vrot.slane %v2510, 3
    %v2529 = vrot.slane %v2512, 3
    %v2530 = vrot.slane %v2439, 4
    %v2531 = vrot.slane %v2441, 4
    %v2532 = vrot.slane %v2510, 4
    %v2533 = vrot.slane %v2512, 4
    %v2550 = vadd.f32 %v187, %v2518
    %v2551 = vadd.f32 %v188, %v2519
    %v2552 = vadd.f32 %v189, %v2520
    %v2553 = vadd.f32 %v190, %v2521
    %v2554 = vadd.f32 %v191, %v2522
    %v2555 = vadd.f32 %v192, %v2523
    %v2556 = vadd.f32 %v193, %v2524
    %v2557 = vadd.f32 %v194, %v2525
    %v2558 = vadd.f32 %v195, %v2526
    %v2559 = vadd.f32 %v196, %v2527
    %v2560 = vadd.f32 %v197, %v2528
    %v2561 = vadd.f32 %v198, %v2529
    %v2562 = vadd.f32 %v199, %v2530
    %v2563 = vadd.f32 %v200, %v2531
    %v2564 = vadd.f32 %v201, %v2532
    %v2565 = vadd.f32 %v202, %v2533
    %v2566 = vxor.u32 %v2550, 2147483648
    %v2567 = vxor.u32 %v2551, 2147483648
    %v2568 = vxor.u32 %v2552, 2147483648
    %v2569 = vxor.u32 %v2554, 2147483648
    %v2570 = vxor.u32 %v2555, 2147483648
    %v2571 = vxor.u32 %v2556, 2147483648
    %v2572 = vxor.u32 %v2558, 2147483648
    %v2573 = vxor.u32 %v2559, 2147483648
    %v2574 = vxor.u32 %v2560, 2147483648
    %v2575 = vxor.u32 %v2562, 2147483648
    %v2576 = vxor.u32 %v2563, 2147483648
    %v2577 = vxor.u32 %v2564, 2147483648
    %v2578 = vmul.f32 %v2566, 1.442695
    %v2579 = vpow.pop %v2578
    %v2580 = vmul.f32 %v2567, 1.442695
    %v2581 = vpow.pop %v2580
    %v2582 = vmul.f32 %v2568, 1.442695
    %v2583 = vpow.pop %v2582
    %v2584 = vmul.f32 %v2569, 1.442695
    %v2585 = vpow.pop %v2584
    %v2586 = vmul.f32 %v2570, 1.442695
    %v2587 = vpow.pop %v2586
    %v2588 = vmul.f32 %v2571, 1.442695
    %v2589 = vpow.pop %v2588
    %v2590 = vmul.f32 %v2572, 1.442695
    %v2591 = vpow.pop %v2590
    %v2592 = vmul.f32 %v2573, 1.442695
    %v2593 = vpow.pop %v2592
    %v2594 = vmul.f32 %v2574, 1.442695
    %v2595 = vpow.pop %v2594
    %v2596 = vmul.f32 %v2575, 1.442695
    %v2597 = vpow.pop %v2596
    %v2598 = vmul.f32 %v2576, 1.442695
    %v2599 = vpow.pop %v2598
    %v2600 = vmul.f32 %v2577, 1.442695
    %v2601 = vpow.pop %v2600
    %v2602 = vadd.f32 %v2579, 1.0
    %v2603 = vadd.f32 %v2581, 1.0
    %v2604 = vadd.f32 %v2583, 1.0
    %v2605 = vadd.f32 %v2585, 1.0
    %v2606 = vadd.f32 %v2587, 1.0
    %v2607 = vadd.f32 %v2589, 1.0
    %v2608 = vadd.f32 %v2591, 1.0
    %v2609 = vadd.f32 %v2593, 1.0
    %v2610 = vadd.f32 %v2595, 1.0
    %v2611 = vadd.f32 %v2597, 1.0
    %v2612 = vadd.f32 %v2599, 1.0
    %v2613 = vadd.f32 %v2601, 1.0
    %v2614 = vrcp.pop %v2602
    %v2615 = vmul.f32 1.0, %v2614
    %v2616 = vrcp.pop %v2603
    %v2617 = vmul.f32 1.0, %v2616
    %v2618 = vrcp.pop %v2604
    %v2619 = vmul.f32 1.0, %v2618
    %v2620 = vrcp.pop %v2605
    %v2621 = vmul.f32 1.0, %v2620
    %v2622 = vrcp.pop %v2606
    %v2623 = vmul.f32 1.0, %v2622
    %v2624 = vrcp.pop %v2607
    %v2625 = vmul.f32 1.0, %v2624
    %v2626 = vrcp.pop %v2608
    %v2627 = vmul.f32 1.0, %v2626
    %v2628 = vrcp.pop %v2609
    %v2629 = vmul.f32 1.0, %v2628
    %v2630 = vrcp.pop %v2610
    %v2631 = vmul.f32 1.0, %v2630
    %v2632 = vrcp.pop %v2611
    %v2633 = vmul.f32 1.0, %v2632
    %v2634 = vrcp.pop %v2612
    %v2635 = vmul.f32 1.0, %v2634
    %v2636 = vrcp.pop %v2613
    %v2637 = vmul.f32 1.0, %v2636
    %v2638 = vtanh.pop %v2553
    %v2639 = vtanh.pop %v2557
    %v2640 = vtanh.pop %v2561
    %v2641 = vtanh.pop %v2565
    %v2646 = vrot.slane %v2348, 7
    %v2647 = vrot.slane %v2349, 7
    %v2648 = vrot.slane %v2350, 7
    %v2649 = vrot.slane %v2351, 7
    %v2654 = vmul.f32 %v2617, %v2646
    %v2655 = vmul.f32 %v2623, %v2647
    %v2656 = vmul.f32 %v2629, %v2648
    %v2657 = vmul.f32 %v2635, %v2649
    %v2658 = vmul.f32 %v2615, %v2638
    %v2659 = vmul.f32 %v2621, %v2639
    %v2660 = vmul.f32 %v2627, %v2640
    %v2661 = vmul.f32 %v2633, %v2641
    %v2662 = vadd.f32 %v2654, %v2658
    %v2663 = vadd.f32 %v2655, %v2659
    %v2664 = vadd.f32 %v2656, %v2660
    %v2665 = vadd.f32 %v2657, %v2661
    %v2666 = vtanh.pop %v2662
    %v2667 = vtanh.pop %v2663
    %v2668 = vtanh.pop %v2664
    %v2669 = vtanh.pop %v2665
    %v2670 = vmul.f32 %v2619, %v2666
    %v2671 = vmul.f32 %v2625, %v2667
    %v2672 = vmul.f32 %v2631, %v2668
    %v2673 = vmul.f32 %v2637, %v2669
    %v2674 = vld [vmem:[%s4] sm:$0xff]
    %v2675 = vld [vmem:[%s4 + $0x8] sm:$0xff]
    %v2676 = vld [vmem:[%s4 + $0x10] sm:$0xff]
    %v2677 = vld [vmem:[%s4 + $0x18] sm:$0xff]
    %v2678 = vld [vmem:[%s4 + $0x20] sm:$0xff]
    %v2679 = vld [vmem:[%s4 + $0x28] sm:$0xff]
    %v2680 = vld [vmem:[%s4 + $0x30] sm:$0xff]
    %v2681 = vld [vmem:[%s4 + $0x38] sm:$0xff]
    %v2682 = vld [vmem:[%s4 + $0x40] sm:$0xff]
    %v2683 = vld [vmem:[%s4 + $0x48] sm:$0xff]
    %v2684 = vld [vmem:[%s4 + $0x50] sm:$0xff]
    %v2685 = vld [vmem:[%s4 + $0x58] sm:$0xff]
    %v2686 = vld [vmem:[%s4 + $0x60] sm:$0xff]
    %v2687 = vld [vmem:[%s4 + $0x68] sm:$0xff]
    %v2688 = vld [vmem:[%s4 + $0x70] sm:$0xff]
    %v2689 = vld [vmem:[%s4 + $0x78] sm:$0xff]
    %v2690 = vld [vmem:[#allocation2] sm:$0x1]
    %v2692 = vlaneseq
    %v2693 = vshrl.u32 %v2692, 7
    %v2694 = vsub.s32 0, %v2693
    %v2695 = vrot.slane %v2690, %v2694
    %v2701 = vrot.slane %v2670, 7
    %v2702 = vrot.slane %v2671, 6
    %v2703 = vsel %vm494, %v2702, %v2701
    %v2704 = vrot.slane %v2672, 5
    %v2705 = vsel %vm497, %v2704, %v2703
    %v2706 = vrot.slane %v2673, 4
    %v2707 = vsel %vm500, %v2706, %v2705
    %2709 = vmatprep.subr.mxu0 0.0
    %2710 = vmatpush1.msra.mxu0 %v2689
    %2711 = vmatprep.subr.mxu0 0.0
    %2712 = vmatpush1.msra.mxu0 %v2688
    %2713 = vmatprep.subr.mxu0 0.0
    %2714 = vmatpush1.msra.mxu0 %v2687
    %2715 = vmatprep.subr.mxu0 0.0
    %2716 = vmatpush1.msra.mxu0 %v2686
    %2717 = vmatprep.subr.mxu0 0.0
    %2718 = vmatpush1.msra.mxu0 %v2685
    %2719 = vmatprep.subr.mxu0 0.0
    %2720 = vmatpush1.msra.mxu0 %v2684
    %2721 = vmatprep.subr.mxu0 0.0
    %2722 = vmatpush1.msra.mxu0 %v2683
    %2723 = vmatprep.subr.mxu0 0.0
    %2724 = vmatpush1.msra.mxu0 %v2682
    %2725 = vmatprep.subr.mxu0 0.0
    %2726 = vmatpush1.msra.mxu0 %v2681
    %2727 = vmatprep.subr.mxu0 0.0
    %2728 = vmatpush1.msra.mxu0 %v2680
    %2729 = vmatprep.subr.mxu0 0.0
    %2730 = vmatpush1.msra.mxu0 %v2679
    %2731 = vmatprep.subr.mxu0 0.0
    %2732 = vmatpush1.msra.mxu0 %v2678
    %2733 = vmatprep.subr.mxu0 0.0
    %2734 = vmatpush1.msra.mxu0 %v2677
    %2735 = vmatprep.subr.mxu0 0.0
    %2736 = vmatpush1.msra.mxu0 %v2676
    %2737 = vmatprep.subr.mxu0 0.0
    %2738 = vmatpush1.msra.mxu0 %v2675
    %2739 = vmatprep.subr.mxu0 0.0
    %2740 = vmatpush1.msra.mxu0 %v2674
    %2741 = vmatprep.subr.mxu0 0.0
    %2742 = vmatpush2.msra.mxu0 0.0
    %2743 = vmatprep.subr.mxu0 0.0
    %2744 = vmatpush2.msra.mxu0 0.0
    %2745 = vmatprep.subr.mxu0 0.0
    %2746 = vmatpush2.msra.mxu0 0.0
    %2747 = vmatprep.subr.mxu0 0.0
    %2748 = vmatpush2.msra.mxu0 0.0
    %2749 = vmatprep.subr.mxu0 0.0
    %2750 = vmatpush2.msra.mxu0 0.0
    %2751 = vmatprep.subr.mxu0 0.0
    %2752 = vmatpush2.msra.mxu0 0.0
    %2753 = vmatprep.subr.mxu0 0.0
    %2754 = vmatpush2.msra.mxu0 0.0
    %2755 = vmatprep.subr.mxu0 0.0
    %2756 = vmatpush2.msra.mxu0 0.0
    %2757 = vmatprep.subr.mxu0 0.0
    %2758 = vmatpush2.msra.mxu0 0.0
    %2759 = vmatprep.subr.mxu0 0.0
    %2760 = vmatpush2.msra.mxu0 0.0
    %2761 = vmatprep.subr.mxu0 0.0
    %2762 = vmatpush2.msra.mxu0 0.0
    %2763 = vmatprep.subr.mxu0 0.0
    %2764 = vmatpush2.msra.mxu0 0.0
    %2765 = vmatprep.subr.mxu0 0.0
    %2766 = vmatpush2.msra.mxu0 0.0
    %2767 = vmatprep.subr.mxu0 0.0
    %2768 = vmatpush2.msra.mxu0 0.0
    %2769 = vmatprep.subr.mxu0 0.0
    %2770 = vmatpush2.msra.mxu0 0.0
    %2771 = vmatprep.subr.mxu0 0.0
    %2772 = vmatpush2.msra.mxu0 0.0
    %2773 = vmatprep.mubr.f32.mxu0 0.0
    %2774 = vmatmul.mubr.f32.gmra.mxu0 %v2707
    %v2775 = vpop.f32.mrf.mxu0
    %v2776 = vadd.f32 %v2695, %v2775
    %v2777 = vpop.f32.mrf.mxu0
    %2778 = vdwg.mxu0
    %vm2779 = vcmask 3072
    %2780 = vst.msk [vmem:[%s6] sm:$0xf] %vm2779, %v2776
    // Predicated region
    $region30: #{tpu_custom_call.1} parent=1 // pred_check
      _
    $region31: #{tpu_custom_call.1} parent=1 // pred_check_branch
      %2782 = sbr.rel (0) target = $region33
    $region32: #{tpu_custom_call.1} parent=1 // pred_region
      _
    $region33: #{tpu_custom_call.1} parent=1 // pred_fallthru
      _
    // Predicated region
    $region34: #{tpu_custom_call.1} parent=1 // pred_check
      _
    $region35: #{tpu_custom_call.1} parent=1 // pred_check_branch
      %2784 = sbr.rel (0) target = $region37
    $region36: #{tpu_custom_call.1} parent=1 // pred_region
      _
    $region37: #{tpu_custom_call.1} parent=1 // pred_fallthru
      _
    %2785 = vsyncpa [#allocation4], 1

</llo_original>
